<compile_context>
chip_gen: v6e
topology: v6e:2x2x1
jax: 0.10.0
libtpu: 0.0.40
codegen_flags: <defaults>
</compile_context>

<pallas_src>
import jax
import jax.numpy as jnp
from jax import lax
from jax.experimental import pallas as pl
from jax.experimental.pallas import tpu as pltpu

IN_CHANNELS = 20          # module constant
LAYER_SIZES = (64, 8)     # signatory.Augment(layer_sizes=(64, 8), kernel_size=1)
SIG_DEPTH = 3             # kernel hard-codes depth 3 (level-1/2/3 state)
OUT_DIM = 1               # nn.Linear(sig_channels, 1)
NEG_SLOPE = 0.01          # nn.LeakyReLU() default negative_slope


def _leaky(x):
    # LeakyReLU(0.01) == max(x, 0.01*x): 2 VPU ops per element (vs cmp+sel+mul).
    return jnp.maximum(x, NEG_SLOPE * x)


# ----------------------------------------------------------------------------
# Kernel 1: Augment's pointwise MLP (Conv1d k=1 -> LeakyReLU -> Conv1d k=1),
# tiled over rows (B*S) so it pipelines and VMEM stays bounded for large B*S.
# ----------------------------------------------------------------------------
def _augment_kernel(x_ref, w1_ref, b1_ref, w2_ref, b2_ref, o_ref):
    h = jnp.dot(x_ref[...], w1_ref[...], preferred_element_type=jnp.float32)
    h = _leaky(h + b1_ref[...])                       # activation between layers only
    o_ref[...] = jnp.dot(h, w2_ref[...], preferred_element_type=jnp.float32) + b2_ref[...]


def augment_mlp(x2d, w1, b1, w2, b2):
    # x2d: (N, Cin); w1: (Cin, H); b1: (1, H); w2: (H, F); b2: (1, F)
    N, Cin = x2d.shape
    H, F = w1.shape[1], w2.shape[1]
    TN = 256 if N >= 256 else ((N + 7) // 8) * 8
    Np = ((N + TN - 1) // TN) * TN
    xp = x2d if Np == N else jnp.pad(x2d, ((0, Np - N), (0, 0)))
    out = pl.pallas_call(
        _augment_kernel,
        out_shape=jax.ShapeDtypeStruct((Np, F), jnp.float32),
        grid=(Np // TN,),
        in_specs=[
            pl.BlockSpec((TN, Cin), lambda i: (i, 0)),
            pl.BlockSpec((Cin, H), lambda i: (0, 0)),
            pl.BlockSpec((1, H), lambda i: (0, 0)),
            pl.BlockSpec((H, F), lambda i: (0, 0)),
            pl.BlockSpec((1, F), lambda i: (0, 0)),
        ],
        out_specs=pl.BlockSpec((TN, F), lambda i: (i, 0)),
        compiler_params=pltpu.CompilerParams(dimension_semantics=("parallel",)),
    )(xp, w1, b1, w2, b2)
    return out if Np == N else out[:N]


# ----------------------------------------------------------------------------
# Kernel 2 (fused): streamed depth-3 signature (Chen, basepoint=True)
#                   + LeakyReLU + Linear(sig_channels, 1) head.
# Per batch element: one grid step, fori_loop over the stream, state in VMEM.
# Output is a lane-dense (1, S) row per batch element (written back once).
# ----------------------------------------------------------------------------
def _sig_head_kernel(xa_ref, q_ref, p_ref, wl1_ref, wl2_ref, wl3_ref, bl_ref,
                     z_ref, a1c, a2, a3, prev):
    S, C = xa_ref.shape

    # Fresh batch element: reset signature state; basepoint = origin.
    a1c[...] = jnp.zeros_like(a1c)
    a2[...] = jnp.zeros_like(a2)
    a3[...] = jnp.zeros_like(a3)
    prev[...] = jnp.zeros_like(prev)
    z_ref[...] = jnp.zeros_like(z_ref)

    # eye mask: turns a (1, C) row into a (C, 1) column via multiply + lane reduce.
    eye = (lax.broadcasted_iota(jnp.int32, (C, C), 0) ==
           lax.broadcasted_iota(jnp.int32, (C, C), 1)).astype(jnp.float32)
    # lane positions of the (1, S) output row (hoisted out of the step loop).
    s_pos = lax.broadcasted_iota(jnp.int32, (1, S), 1)
    bias = bl_ref[...]                                         # (1, 1)

    def step(t, carry):
        x_r = xa_ref[pl.ds(t, 1), :]                           # (1, C) current point
        d_r = x_r - prev[...]                                  # increment Delta_t (row)
        prev[...] = x_r
        d_c = jnp.sum(d_r * eye, axis=1, keepdims=True)        # (C, 1) column layout

        a1_old = a1c[...]                                      # (C, 1)
        a2_old = a2[...]                                       # (C, C)

        # Chen level 3:  A3[i, j*C+k] += W[i, j] * d[k],
        #                W = A2 + (A1/2 + d/6) (outer) d
        w = a2_old + (0.5 * a1_old + (1.0 / 6.0) * d_c) * d_r               # (C, C)
        # replicate W along lanes (MXU, Q is constant 0/1):  w_rep[i, j*C+k] = W[i, j]
        w_rep = jnp.dot(w, q_ref[...], preferred_element_type=jnp.float32)  # (C, C*C)
        # tile d along lanes (exact, VPU + sublane reduce):   d_til[0, j*C+k] = d[k]
        d_til = jnp.sum(p_ref[...] * d_c, axis=0, keepdims=True)            # (1, C*C)
        a3[...] = a3[...] + w_rep * d_til

        # Chen level 2 / level 1.
        a2[...] = a2_old + (a1_old + 0.5 * d_c) * d_r
        a1c[...] = a1_old + d_c

        # Fused LeakyReLU + Linear(sig_channels, 1) head on the running signature.
        s1 = jnp.sum(wl1_ref[...] * _leaky(a1c[...]), axis=0, keepdims=True)          # (1,1)
        s2 = jnp.sum(jnp.sum(wl2_ref[...] * _leaky(a2[...]), axis=1, keepdims=True),
                     axis=0, keepdims=True)                                            # (1,1)
        s3 = jnp.sum(jnp.sum(wl3_ref[...] * _leaky(a3[...]), axis=1, keepdims=True),
                     axis=0, keepdims=True)                                            # (1,1)
        s_t = s1 + s2 + s3 + bias                                                      # (1,1)
        # Lane-dense scatter: place the scalar in lane t of the (1, S) output row.
        z_ref[...] = jnp.where(s_pos == t, s_t, z_ref[...])
        return carry

    lax.fori_loop(0, S, step, 0)


def sig_head_stream(xa, wl1c, wl2m, wl3m, bl, qmat, pmat):
    # xa: (B, S, C) augmented path; returns (B, S, 1) head output.
    # TODO(synk): for extremely long streams, chunk the stream axis (grid=(B, S//T))
    # to bound the per-step input block; not needed at these sizes.
    B, S, C = xa.shape
    C2 = C * C
    z = pl.pallas_call(
        _sig_head_kernel,
        out_shape=jax.ShapeDtypeStruct((B, 1, S), jnp.float32),
        grid=(B,),
        in_specs=[
            pl.BlockSpec((None, S, C), lambda b: (b, 0, 0)),   # one batch element's path
            pl.BlockSpec((C, C2), lambda b: (0, 0)),           # Q: lane replication matrix
            pl.BlockSpec((C, C2), lambda b: (0, 0)),           # P: lane tiling matrix
            pl.BlockSpec((C, 1), lambda b: (0, 0)),            # head weights, level 1
            pl.BlockSpec((C, C), lambda b: (0, 0)),            # head weights, level 2 [i,j]
            pl.BlockSpec((C, C2), lambda b: (0, 0)),           # head weights, level 3 [i, j*C+k]
            pl.BlockSpec((1, 1), lambda b: (0, 0)),            # head bias
        ],
        out_specs=pl.BlockSpec((None, 1, S), lambda b: (b, 0, 0)),   # lane-dense (1, S) row
        scratch_shapes=[
            pltpu.VMEM((C, 1), jnp.float32),    # A1 (column)
            pltpu.VMEM((C, C), jnp.float32),    # A2  [i, j]
            pltpu.VMEM((C, C2), jnp.float32),   # A3  [i, j*C + k]  (lane-dense)
            pltpu.VMEM((1, C), jnp.float32),    # previous stream point (row)
        ],
        compiler_params=pltpu.CompilerParams(dimension_semantics=("parallel",)),
    )(xa, qmat, pmat, wl1c, wl2m, wl3m, bl)
    # (B, 1, S) -> (B, S, 1): same element order, pure-metadata reshape.
    return z.reshape(B, S, 1)


# ----------------------------------------------------------------------------
# Full forward (Pallas kernels for the hot paths; tiny concat/reshape are glue).
# ----------------------------------------------------------------------------
def signet_forward(x, params):
    w1, b1, w2, b2, wl, bl = params
    B, S, Cin = x.shape
    if S <= 1:
        raise RuntimeError("Given an input with too short a stream to take the signature")

    # signatory.Augment: [original, time, learned features] along channels.
    feat = augment_mlp(x.reshape(B * S, Cin), w1, b1, w2, b2).reshape(B, S, LAYER_SIZES[-1])
    time = jnp.broadcast_to(
        jnp.linspace(0.0, 1.0, S, dtype=jnp.float32).reshape(1, S, 1), (B, S, 1))
    xa = jnp.concatenate([x, time, feat], axis=-1)             # (B, S, C), C = Cin + 9
    C = xa.shape[-1]
    C2 = C * C

    # Head weight split into per-level blocks matching in-kernel state layouts
    # (signatory ordering: levels concatenated in increasing depth, row-major).
    wl1c = wl[:C].reshape(C, 1)
    wl2m = wl[C:C + C2].reshape(C, C)                          # [i, j]
    wl3m = wl[C + C2:].reshape(C, C2)                          # [i, j*C + k]

    # Constant 0/1 matrices used by the kernel:
    #   Q[m, j*C+k] = 1{m == j}  (lane replication, via MXU)
    #   P[m, j*C+k] = 1{m == k}  (lane tiling, via VPU reduce)
    eye = jnp.eye(C, dtype=jnp.float32)
    qmat = jnp.repeat(eye, C, axis=1)
    pmat = jnp.tile(eye, (1, C))

    return sig_head_stream(xa, wl1c, wl2m, wl3m, bl, qmat, pmat)   # (B, S, 1)


# ----------------------------------------------------------------------------
# Pure-JAX reference (for correctness check only).
# ----------------------------------------------------------------------------
def reference_forward(x, params):
    w1, b1, w2, b2, wl, bl = params
    B, S, _ = x.shape
    h = _leaky(jnp.einsum("bsc,cd->bsd", x, w1, precision="highest") + b1)
    feat = jnp.einsum("bsc,cd->bsd", h, w2, precision="highest") + b2
    time = jnp.broadcast_to(
        jnp.linspace(0.0, 1.0, S, dtype=jnp.float32).reshape(1, S, 1), (B, S, 1))
    xa = jnp.concatenate([x, time, feat], axis=-1)
    C = xa.shape[-1]
    prev = jnp.zeros((B, C), jnp.float32)
    A1 = jnp.zeros((B, C), jnp.float32)
    A2 = jnp.zeros((B, C, C), jnp.float32)
    A3 = jnp.zeros((B, C, C, C), jnp.float32)
    ys = []
    for t in range(S):
        d = xa[:, t, :] - prev
        prev = xa[:, t, :]
        B2 = 0.5 * jnp.einsum("bi,bj->bij", d, d)
        B3 = jnp.einsum("bi,bj,bk->bijk", d, d, d) / 6.0
        A3 = A3 + jnp.einsum("bij,bk->bijk", A2, d) + jnp.einsum("bi,bjk->bijk", A1, B2) + B3
        A2 = A2 + jnp.einsum("bi,bj->bij", A1, d) + B2
        A1 = A1 + d
        ys.append(jnp.concatenate([A1, A2.reshape(B, -1), A3.reshape(B, -1)], axis=-1))
    y = jnp.stack(ys, axis=1)
    v = _leaky(y)
    return jnp.einsum("bsk,ko->bso", v, wl, precision="highest") + bl.reshape(1, 1, -1)


def init_params(key):
    k1, k2, k3, k4, k5, k6 = jax.random.split(key, 6)
    C = IN_CHANNELS + 9
    sig_channels = C + C * C + C ** 3
    w1 = jax.random.normal(k1, (IN_CHANNELS, LAYER_SIZES[0]), jnp.float32) * 0.2
    b1 = jax.random.normal(k2, (1, LAYER_SIZES[0]), jnp.float32) * 0.05
    w2 = jax.random.normal(k3, (LAYER_SIZES[0], LAYER_SIZES[1]), jnp.float32) * 0.2
    b2 = jax.random.normal(k4, (1, LAYER_SIZES[1]), jnp.float32) * 0.05
    wl = jax.random.normal(k5, (sig_channels, OUT_DIM), jnp.float32) * 0.01
    bl = jax.random.normal(k6, (1, OUT_DIM), jnp.float32) * 0.01
    return (w1, b1, w2, b2, wl, bl)


if __name__ == "__main__":
    key = jax.random.PRNGKey(0)
    kx, kp = jax.random.split(key)
    B, S = 2, 8
    x = jax.random.normal(kx, (B, S, IN_CHANNELS), jnp.float32) * 0.5
    params = init_params(kp)

    z = jax.jit(signet_forward)(x, params)
    z = jax.block_until_ready(z)

    z_ref = reference_forward(x, params)
    assert z.shape == (B, S, OUT_DIM)
    assert bool(jnp.all(jnp.isfinite(z)))
    rel_err = float(jnp.max(jnp.abs(z - z_ref)) / (jnp.max(jnp.abs(z_ref)) + 1e-6))
    # headroom only for MXU f32 pass rounding (same matmul paths as the proven v2)
    assert rel_err < 2e-2, f"kernel/reference mismatch: rel err {rel_err}"
    print("KERNEL_OK")
</pallas_src>

<mosaic_0001>
module attributes {stable_mosaic.version = 11 : i64} {
  func.func @_augment_kernel(%arg0: i32, %arg1: memref<16x20xf32, #tpu.memory_space<vmem>>, %arg2: memref<20x64xf32, #tpu.memory_space<vmem>>, %arg3: memref<1x64xf32, #tpu.memory_space<vmem>>, %arg4: memref<64x8xf32, #tpu.memory_space<vmem>>, %arg5: memref<1x8xf32, #tpu.memory_space<vmem>>, %arg6: memref<16x8xf32, #tpu.memory_space<vmem>>) attributes {dimension_semantics = [#tpu.dimension_semantics<parallel>], iteration_bounds = array<i64: 1>, scalar_prefetch = 0 : i64, scratch_operands = 0 : i64, tpu.core_type = #tpu.core_type<tc>, window_params = [{transform_indices = @transform_0, window_bounds = array<i64: 16, 20>}, {pipeline_mode = #tpu.pipeline_mode<synchronous>, transform_indices = @transform_1, window_bounds = array<i64: 20, 64>}, {pipeline_mode = #tpu.pipeline_mode<synchronous>, transform_indices = @transform_2, window_bounds = array<i64: 1, 64>}, {pipeline_mode = #tpu.pipeline_mode<synchronous>, transform_indices = @transform_3, window_bounds = array<i64: 64, 8>}, {pipeline_mode = #tpu.pipeline_mode<synchronous>, transform_indices = @transform_4, window_bounds = array<i64: 1, 8>}, {transform_indices = @transform_5, window_bounds = array<i64: 16, 8>}]} {
    %c0 = arith.constant 0 : index
    %c0_0 = arith.constant 0 : index
    %0 = vector.load %arg1[%c0, %c0_0] : memref<16x20xf32, #tpu.memory_space<vmem>>, vector<16x20xf32>
    %c0_1 = arith.constant 0 : index
    %c0_2 = arith.constant 0 : index
    %1 = vector.load %arg2[%c0_1, %c0_2] : memref<20x64xf32, #tpu.memory_space<vmem>>, vector<20x64xf32>
    %cst = arith.constant dense<0.000000e+00> : vector<16x64xf32>
    %2 = tpu.matmul %0, %1, %cst {dimension_numbers = #tpu.dot_dimension_numbers<[1], [0], [0], [1], [0, 0, 1, 1], [], []>} : vector<16x20xf32>, vector<20x64xf32>, vector<16x64xf32> -> vector<16x64xf32>
    %c0_3 = arith.constant 0 : index
    %c0_4 = arith.constant 0 : index
    %3 = vector.load %arg3[%c0_3, %c0_4] : memref<1x64xf32, #tpu.memory_space<vmem>>, vector<1x64xf32>
    %4 = vector.broadcast %3 : vector<1x64xf32> to vector<16x64xf32>
    %5 = arith.addf %2, %4 : vector<16x64xf32>
    %cst_5 = arith.constant 0.00999999977 : f32
    %6 = vector.broadcast %cst_5 : f32 to vector<16x64xf32>
    %7 = arith.mulf %6, %5 : vector<16x64xf32>
    %8 = arith.maximumf %5, %7 : vector<16x64xf32>
    %c0_6 = arith.constant 0 : index
    %c0_7 = arith.constant 0 : index
    %9 = vector.load %arg4[%c0_6, %c0_7] : memref<64x8xf32, #tpu.memory_space<vmem>>, vector<64x8xf32>
    %cst_8 = arith.constant dense<0.000000e+00> : vector<16x8xf32>
    %10 = tpu.matmul %8, %9, %cst_8 {dimension_numbers = #tpu.dot_dimension_numbers<[1], [0], [0], [1], [0, 0, 1, 1], [], []>} : vector<16x64xf32>, vector<64x8xf32>, vector<16x8xf32> -> vector<16x8xf32>
    %c0_9 = arith.constant 0 : index
    %c0_10 = arith.constant 0 : index
    %11 = vector.load %arg5[%c0_9, %c0_10] : memref<1x8xf32, #tpu.memory_space<vmem>>, vector<1x8xf32>
    %12 = vector.broadcast %11 : vector<1x8xf32> to vector<16x8xf32>
    %13 = arith.addf %10, %12 : vector<16x8xf32>
    %c0_11 = arith.constant 0 : index
    %c0_12 = arith.constant 0 : index
    %14 = vector.load %arg6[%c0_11, %c0_12] : memref<16x8xf32, #tpu.memory_space<vmem>>, vector<16x8xf32>
    tpu.vector_store %arg6[%c0_11, %c0_12], %13 {strides = array<i32>} : memref<16x8xf32, #tpu.memory_space<vmem>>, vector<16x8xf32>,
    return
  }
  func.func @transform_0(%arg0: i32) -> (i32, i32) {
    %c0_i32 = arith.constant 0 : i32
    %c0_i32_0 = arith.constant 0 : i32
    return %arg0, %c0_i32 : i32, i32
  }
  func.func @transform_1(%arg0: i32) -> (i32, i32) {
    %c0_i32 = arith.constant 0 : i32
    %c0_i32_0 = arith.constant 0 : i32
    %c0_i32_1 = arith.constant 0 : i32
    return %c0_i32, %c0_i32_0 : i32, i32
  }
  func.func @transform_2(%arg0: i32) -> (i32, i32) {
    %c0_i32 = arith.constant 0 : i32
    %c0_i32_0 = arith.constant 0 : i32
    %c0_i32_1 = arith.constant 0 : i32
    return %c0_i32, %c0_i32_0 : i32, i32
  }
  func.func @transform_3(%arg0: i32) -> (i32, i32) {
    %c0_i32 = arith.constant 0 : i32
    %c0_i32_0 = arith.constant 0 : i32
    %c0_i32_1 = arith.constant 0 : i32
    return %c0_i32, %c0_i32_0 : i32, i32
  }
  func.func @transform_4(%arg0: i32) -> (i32, i32) {
    %c0_i32 = arith.constant 0 : i32
    %c0_i32_0 = arith.constant 0 : i32
    %c0_i32_1 = arith.constant 0 : i32
    return %c0_i32, %c0_i32_0 : i32, i32
  }
  func.func @transform_5(%arg0: i32) -> (i32, i32) {
    %c0_i32 = arith.constant 0 : i32
    %c0_i32_0 = arith.constant 0 : i32
    return %arg0, %c0_i32 : i32, i32
  }
}

module attributes {stable_mosaic.version = 11 : i64} {
  func.func @_sig_head_kernel(%arg0: i32, %arg1: memref<1x8x29xf32, #tpu.memory_space<vmem>>, %arg2: memref<29x841xf32, #tpu.memory_space<vmem>>, %arg3: memref<29x841xf32, #tpu.memory_space<vmem>>, %arg4: memref<29x1xf32, #tpu.memory_space<vmem>>, %arg5: memref<29x29xf32, #tpu.memory_space<vmem>>, %arg6: memref<29x841xf32, #tpu.memory_space<vmem>>, %arg7: memref<1x1xf32, #tpu.memory_space<vmem>>, %arg8: memref<1x1x8xf32, #tpu.memory_space<vmem>>, %arg9: memref<29x1xf32, #tpu.memory_space<vmem>>, %arg10: memref<29x29xf32, #tpu.memory_space<vmem>>, %arg11: memref<29x841xf32, #tpu.memory_space<vmem>>, %arg12: memref<1x29xf32, #tpu.memory_space<vmem>>) attributes {dimension_semantics = [#tpu.dimension_semantics<parallel>], iteration_bounds = array<i64: 2>, scalar_prefetch = 0 : i64, scratch_operands = 4 : i64, tpu.core_type = #tpu.core_type<tc>, window_params = [{transform_indices = @transform_0, window_bounds = array<i64: 1, 8, 29>}, {pipeline_mode = #tpu.pipeline_mode<synchronous>, transform_indices = @transform_1, window_bounds = array<i64: 29, 841>}, {pipeline_mode = #tpu.pipeline_mode<synchronous>, transform_indices = @transform_2, window_bounds = array<i64: 29, 841>}, {pipeline_mode = #tpu.pipeline_mode<synchronous>, transform_indices = @transform_3, window_bounds = array<i64: 29, 1>}, {pipeline_mode = #tpu.pipeline_mode<synchronous>, transform_indices = @transform_4, window_bounds = array<i64: 29, 29>}, {pipeline_mode = #tpu.pipeline_mode<synchronous>, transform_indices = @transform_5, window_bounds = array<i64: 29, 841>}, {pipeline_mode = #tpu.pipeline_mode<synchronous>, transform_indices = @transform_6, window_bounds = array<i64: 1, 1>}, {transform_indices = @transform_7, window_bounds = array<i64: 1, 1, 8>}]} {
    %cst = arith.constant 0.000000e+00 : f32
    %0 = vector.broadcast %cst : f32 to vector<29x1xf32>
    %c0 = arith.constant 0 : index
    %c0_0 = arith.constant 0 : index
    %1 = vector.load %arg9[%c0, %c0_0] : memref<29x1xf32, #tpu.memory_space<vmem>>, vector<29x1xf32>
    tpu.vector_store %arg9[%c0, %c0_0], %0 {strides = array<i32>} : memref<29x1xf32, #tpu.memory_space<vmem>>, vector<29x1xf32>,
    %cst_1 = arith.constant 0.000000e+00 : f32
    %2 = vector.broadcast %cst_1 : f32 to vector<29x29xf32>
    %c0_2 = arith.constant 0 : index
    %c0_3 = arith.constant 0 : index
    %3 = vector.load %arg10[%c0_2, %c0_3] : memref<29x29xf32, #tpu.memory_space<vmem>>, vector<29x29xf32>
    tpu.vector_store %arg10[%c0_2, %c0_3], %2 {strides = array<i32>} : memref<29x29xf32, #tpu.memory_space<vmem>>, vector<29x29xf32>,
    %cst_4 = arith.constant 0.000000e+00 : f32
    %4 = vector.broadcast %cst_4 : f32 to vector<29x841xf32>
    %c0_5 = arith.constant 0 : index
    %c0_6 = arith.constant 0 : index
    %5 = vector.load %arg11[%c0_5, %c0_6] : memref<29x841xf32, #tpu.memory_space<vmem>>, vector<29x841xf32>
    tpu.vector_store %arg11[%c0_5, %c0_6], %4 {strides = array<i32>} : memref<29x841xf32, #tpu.memory_space<vmem>>, vector<29x841xf32>,
    %cst_7 = arith.constant 0.000000e+00 : f32
    %6 = vector.broadcast %cst_7 : f32 to vector<1x29xf32>
    %c0_8 = arith.constant 0 : index
    %c0_9 = arith.constant 0 : index
    %7 = vector.load %arg12[%c0_8, %c0_9] : memref<1x29xf32, #tpu.memory_space<vmem>>, vector<1x29xf32>
    tpu.vector_store %arg12[%c0_8, %c0_9], %6 {strides = array<i32>} : memref<1x29xf32, #tpu.memory_space<vmem>>, vector<1x29xf32>,
    %cst_10 = arith.constant 0.000000e+00 : f32
    %8 = vector.broadcast %cst_10 : f32 to vector<1x8xf32>
    %c0_11 = arith.constant 0 : index
    %c0_12 = arith.constant 0 : index
    %c0_13 = arith.constant 0 : index
    %9 = vector.load %arg8[%c0_11, %c0_12, %c0_13] : memref<1x1x8xf32, #tpu.memory_space<vmem>>, vector<1x1x8xf32>
    %10 = vector.shape_cast %9 : vector<1x1x8xf32> to vector<1x8xf32>
    %11 = vector.shape_cast %8 : vector<1x8xf32> to vector<1x1x8xf32>
    tpu.vector_store %arg8[%c0_11, %c0_12, %c0_13], %11 {strides = array<i32>} : memref<1x1x8xf32, #tpu.memory_space<vmem>>, vector<1x1x8xf32>,
    %12 = tpu.iota {dimensions = array<i32: 0>} : vector<29x29xi32>
    %13 = tpu.iota {dimensions = array<i32: 1>} : vector<29x29xi32>
    %14 = arith.cmpi eq, %12, %13 : vector<29x29xi32>
    %15 = arith.extui %14 : vector<29x29xi1> to vector<29x29xi32>
    %16 = arith.sitofp %15 : vector<29x29xi32> to vector<29x29xf32>
    %17 = tpu.iota {dimensions = array<i32: 1>} : vector<1x8xi32>
    %c0_14 = arith.constant 0 : index
    %c0_15 = arith.constant 0 : index
    %18 = vector.load %arg7[%c0_14, %c0_15] : memref<1x1xf32, #tpu.memory_space<vmem>>, vector<1x1xf32>
    %c0_i32 = arith.constant 0 : i32
    %c8_i32 = arith.constant 8 : i32
    %19 = arith.addi %c0_i32, %c8_i32 : i32
    %c1_i32 = arith.constant 1 : i32
    scf.for %arg13 = %c0_i32 to %19 step %c1_i32  : i32 {
      %c0_17 = arith.constant 0 : index
      %20 = arith.index_cast %arg13 : i32 to index
      %c0_18 = arith.constant 0 : index
      %21 = vector.load %arg1[%c0_17, %20, %c0_18] : memref<1x8x29xf32, #tpu.memory_space<vmem>>, vector<1x1x29xf32>
      %22 = vector.shape_cast %21 : vector<1x1x29xf32> to vector<1x29xf32>
      %c0_19 = arith.constant 0 : index
      %c0_20 = arith.constant 0 : index
      %23 = vector.load %arg12[%c0_19, %c0_20] : memref<1x29xf32, #tpu.memory_space<vmem>>, vector<1x29xf32>
      %24 = arith.subf %22, %23 : vector<1x29xf32>
      %c0_21 = arith.constant 0 : index
      %c0_22 = arith.constant 0 : index
      %25 = vector.load %arg12[%c0_21, %c0_22] : memref<1x29xf32, #tpu.memory_space<vmem>>, vector<1x29xf32>
      tpu.vector_store %arg12[%c0_21, %c0_22], %22 {strides = array<i32>} : memref<1x29xf32, #tpu.memory_space<vmem>>, vector<1x29xf32>,
      %26 = vector.broadcast %24 : vector<1x29xf32> to vector<29x29xf32>
      %27 = arith.mulf %26, %16 : vector<29x29xf32>
      %cst_23 = arith.constant dense<0.000000e+00> : vector<29xf32>
      %28 = vector.multi_reduction <add>, %27, %cst_23 [1] : vector<29x29xf32> to vector<29xf32>
      %29 = vector.shape_cast %28 : vector<29xf32> to vector<29x1xf32>
      %c0_24 = arith.constant 0 : index
      %c0_25 = arith.constant 0 : index
      %30 = vector.load %arg9[%c0_24, %c0_25] : memref<29x1xf32, #tpu.memory_space<vmem>>, vector<29x1xf32>
      %c0_26 = arith.constant 0 : index
      %c0_27 = arith.constant 0 : index
      %31 = vector.load %arg10[%c0_26, %c0_27] : memref<29x29xf32, #tpu.memory_space<vmem>>, vector<29x29xf32>
      %cst_28 = arith.constant 5.000000e-01 : f32
      %32 = vector.broadcast %cst_28 : f32 to vector<29x1xf32>
      %33 = arith.mulf %32, %30 : vector<29x1xf32>
      %cst_29 = arith.constant 0.166666672 : f32
      %34 = vector.broadcast %cst_29 : f32 to vector<29x1xf32>
      %35 = arith.mulf %34, %29 : vector<29x1xf32>
      %36 = arith.addf %33, %35 : vector<29x1xf32>
      %37 = vector.broadcast %36 : vector<29x1xf32> to vector<29x29xf32>
      %38 = vector.broadcast %24 : vector<1x29xf32> to vector<29x29xf32>
      %39 = arith.mulf %37, %38 : vector<29x29xf32>
      %40 = arith.addf %31, %39 : vector<29x29xf32>
      %c0_30 = arith.constant 0 : index
      %c0_31 = arith.constant 0 : index
      %41 = vector.load %arg2[%c0_30, %c0_31] : memref<29x841xf32, #tpu.memory_space<vmem>>, vector<29x841xf32>
      %cst_32 = arith.constant dense<0.000000e+00> : vector<29x841xf32>
      %42 = tpu.matmul %40, %41, %cst_32 {dimension_numbers = #tpu.dot_dimension_numbers<[1], [0], [0], [1], [0, 0, 1, 1], [], []>} : vector<29x29xf32>, vector<29x841xf32>, vector<29x841xf32> -> vector<29x841xf32>
      %c0_33 = arith.constant 0 : index
      %c0_34 = arith.constant 0 : index
      %43 = vector.load %arg3[%c0_33, %c0_34] : memref<29x841xf32, #tpu.memory_space<vmem>>, vector<29x841xf32>
      %44 = vector.broadcast %29 : vector<29x1xf32> to vector<29x841xf32>
      %45 = arith.mulf %43, %44 : vector<29x841xf32>
      %cst_35 = arith.constant dense<0.000000e+00> : vector<841xf32>
      %46 = vector.multi_reduction <add>, %45, %cst_35 [0] : vector<29x841xf32> to vector<841xf32>
      %47 = vector.shape_cast %46 : vector<841xf32> to vector<1x841xf32>
      %c0_36 = arith.constant 0 : index
      %c0_37 = arith.constant 0 : index
      %48 = vector.load %arg11[%c0_36, %c0_37] : memref<29x841xf32, #tpu.memory_space<vmem>>, vector<29x841xf32>
      %49 = vector.broadcast %47 : vector<1x841xf32> to vector<29x841xf32>
      %50 = arith.mulf %42, %49 : vector<29x841xf32>
      %51 = arith.addf %48, %50 : vector<29x841xf32>
      %c0_38 = arith.constant 0 : index
      %c0_39 = arith.constant 0 : index
      %52 = vector.load %arg11[%c0_38, %c0_39] : memref<29x841xf32, #tpu.memory_space<vmem>>, vector<29x841xf32>
      tpu.vector_store %arg11[%c0_38, %c0_39], %51 {strides = array<i32>} : memref<29x841xf32, #tpu.memory_space<vmem>>, vector<29x841xf32>,
      %cst_40 = arith.constant 5.000000e-01 : f32
      %53 = vector.broadcast %cst_40 : f32 to vector<29x1xf32>
      %54 = arith.mulf %53, %29 : vector<29x1xf32>
      %55 = arith.addf %30, %54 : vector<29x1xf32>
      %56 = vector.broadcast %55 : vector<29x1xf32> to vector<29x29xf32>
      %57 = vector.broadcast %24 : vector<1x29xf32> to vector<29x29xf32>
      %58 = arith.mulf %56, %57 : vector<29x29xf32>
      %59 = arith.addf %31, %58 : vector<29x29xf32>
      %c0_41 = arith.constant 0 : index
      %c0_42 = arith.constant 0 : index
      %60 = vector.load %arg10[%c0_41, %c0_42] : memref<29x29xf32, #tpu.memory_space<vmem>>, vector<29x29xf32>
      tpu.vector_store %arg10[%c0_41, %c0_42], %59 {strides = array<i32>} : memref<29x29xf32, #tpu.memory_space<vmem>>, vector<29x29xf32>,
      %61 = arith.addf %30, %29 : vector<29x1xf32>
      %c0_43 = arith.constant 0 : index
      %c0_44 = arith.constant 0 : index
      %62 = vector.load %arg9[%c0_43, %c0_44] : memref<29x1xf32, #tpu.memory_space<vmem>>, vector<29x1xf32>
      tpu.vector_store %arg9[%c0_43, %c0_44], %61 {strides = array<i32>} : memref<29x1xf32, #tpu.memory_space<vmem>>, vector<29x1xf32>,
      %c0_45 = arith.constant 0 : index
      %c0_46 = arith.constant 0 : index
      %63 = vector.load %arg4[%c0_45, %c0_46] : memref<29x1xf32, #tpu.memory_space<vmem>>, vector<29x1xf32>
      %c0_47 = arith.constant 0 : index
      %c0_48 = arith.constant 0 : index
      %64 = vector.load %arg9[%c0_47, %c0_48] : memref<29x1xf32, #tpu.memory_space<vmem>>, vector<29x1xf32>
      %cst_49 = arith.constant 0.00999999977 : f32
      %65 = vector.broadcast %cst_49 : f32 to vector<29x1xf32>
      %66 = arith.mulf %65, %64 : vector<29x1xf32>
      %67 = arith.maximumf %64, %66 : vector<29x1xf32>
      %68 = arith.mulf %63, %67 : vector<29x1xf32>
      %cst_50 = arith.constant dense<0.000000e+00> : vector<1xf32>
      %69 = vector.multi_reduction <add>, %68, %cst_50 [0] : vector<29x1xf32> to vector<1xf32>
      %70 = vector.shape_cast %69 : vector<1xf32> to vector<1x1xf32>
      %c0_51 = arith.constant 0 : index
      %c0_52 = arith.constant 0 : index
      %71 = vector.load %arg5[%c0_51, %c0_52] : memref<29x29xf32, #tpu.memory_space<vmem>>, vector<29x29xf32>
      %c0_53 = arith.constant 0 : index
      %c0_54 = arith.constant 0 : index
      %72 = vector.load %arg10[%c0_53, %c0_54] : memref<29x29xf32, #tpu.memory_space<vmem>>, vector<29x29xf32>
      %cst_55 = arith.constant 0.00999999977 : f32
      %73 = vector.broadcast %cst_55 : f32 to vector<29x29xf32>
      %74 = arith.mulf %73, %72 : vector<29x29xf32>
      %75 = arith.maximumf %72, %74 : vector<29x29xf32>
      %76 = arith.mulf %71, %75 : vector<29x29xf32>
      %cst_56 = arith.constant dense<0.000000e+00> : vector<29xf32>
      %77 = vector.multi_reduction <add>, %76, %cst_56 [1] : vector<29x29xf32> to vector<29xf32>
      %78 = vector.shape_cast %77 : vector<29xf32> to vector<29x1xf32>
      %cst_57 = arith.constant dense<0.000000e+00> : vector<1xf32>
      %79 = vector.multi_reduction <add>, %78, %cst_57 [0] : vector<29x1xf32> to vector<1xf32>
      %80 = vector.shape_cast %79 : vector<1xf32> to vector<1x1xf32>
      %c0_58 = arith.constant 0 : index
      %c0_59 = arith.constant 0 : index
      %81 = vector.load %arg6[%c0_58, %c0_59] : memref<29x841xf32, #tpu.memory_space<vmem>>, vector<29x841xf32>
      %c0_60 = arith.constant 0 : index
      %c0_61 = arith.constant 0 : index
      %82 = vector.load %arg11[%c0_60, %c0_61] : memref<29x841xf32, #tpu.memory_space<vmem>>, vector<29x841xf32>
      %cst_62 = arith.constant 0.00999999977 : f32
      %83 = vector.broadcast %cst_62 : f32 to vector<29x841xf32>
      %84 = arith.mulf %83, %82 : vector<29x841xf32>
      %85 = arith.maximumf %82, %84 : vector<29x841xf32>
      %86 = arith.mulf %81, %85 : vector<29x841xf32>
      %cst_63 = arith.constant dense<0.000000e+00> : vector<29xf32>
      %87 = vector.multi_reduction <add>, %86, %cst_63 [1] : vector<29x841xf32> to vector<29xf32>
      %88 = vector.shape_cast %87 : vector<29xf32> to vector<29x1xf32>
      %cst_64 = arith.constant dense<0.000000e+00> : vector<1xf32>
      %89 = vector.multi_reduction <add>, %88, %cst_64 [0] : vector<29x1xf32> to vector<1xf32>
      %90 = vector.shape_cast %89 : vector<1xf32> to vector<1x1xf32>
      %91 = arith.addf %70, %80 : vector<1x1xf32>
      %92 = arith.addf %91, %90 : vector<1x1xf32>
      %93 = arith.addf %92, %18 : vector<1x1xf32>
      %94 = vector.broadcast %arg13 : i32 to vector<1x8xi32>
      %95 = arith.cmpi eq, %17, %94 : vector<1x8xi32>
      %c0_65 = arith.constant 0 : index
      %c0_66 = arith.constant 0 : index
      %c0_67 = arith.constant 0 : index
      %96 = vector.load %arg8[%c0_65, %c0_66, %c0_67] : memref<1x1x8xf32, #tpu.memory_space<vmem>>, vector<1x1x8xf32>
      %97 = vector.shape_cast %96 : vector<1x1x8xf32> to vector<1x8xf32>
      %98 = vector.shape_cast %93 : vector<1x1xf32> to vector<1x1xf32>
      %99 = vector.broadcast %98 : vector<1x1xf32> to vector<1x8xf32>
      %100 = arith.select %95, %99, %97 : vector<1x8xi1>, vector<1x8xf32>
      %c0_68 = arith.constant 0 : index
      %c0_69 = arith.constant 0 : index
      %c0_70 = arith.constant 0 : index
      %101 = vector.load %arg8[%c0_68, %c0_69, %c0_70] : memref<1x1x8xf32, #tpu.memory_space<vmem>>, vector<1x1x8xf32>
      %102 = vector.shape_cast %101 : vector<1x1x8xf32> to vector<1x8xf32>
      %103 = vector.shape_cast %100 : vector<1x8xf32> to vector<1x1x8xf32>
      tpu.vector_store %arg8[%c0_68, %c0_69, %c0_70], %103 {strides = array<i32>} : memref<1x1x8xf32, #tpu.memory_space<vmem>>, vector<1x1x8xf32>,
    }
    %c8_i32_16 = arith.constant 8 : i32
    return
  }
  func.func @transform_0(%arg0: i32) -> (i32, i32, i32) {
    %c0_i32 = arith.constant 0 : i32
    %c0_i32_0 = arith.constant 0 : i32
    %c0_i32_1 = arith.constant 0 : i32
    return %arg0, %c0_i32, %c0_i32_0 : i32, i32, i32
  }
  func.func @transform_1(%arg0: i32) -> (i32, i32) {
    %c0_i32 = arith.constant 0 : i32
    %c0_i32_0 = arith.constant 0 : i32
    %c0_i32_1 = arith.constant 0 : i32
    return %c0_i32, %c0_i32_0 : i32, i32
  }
  func.func @transform_2(%arg0: i32) -> (i32, i32) {
    %c0_i32 = arith.constant 0 : i32
    %c0_i32_0 = arith.constant 0 : i32
    %c0_i32_1 = arith.constant 0 : i32
    return %c0_i32, %c0_i32_0 : i32, i32
  }
  func.func @transform_3(%arg0: i32) -> (i32, i32) {
    %c0_i32 = arith.constant 0 : i32
    %c0_i32_0 = arith.constant 0 : i32
    %c0_i32_1 = arith.constant 0 : i32
    return %c0_i32, %c0_i32_0 : i32, i32
  }
  func.func @transform_4(%arg0: i32) -> (i32, i32) {
    %c0_i32 = arith.constant 0 : i32
    %c0_i32_0 = arith.constant 0 : i32
    %c0_i32_1 = arith.constant 0 : i32
    return %c0_i32, %c0_i32_0 : i32, i32
  }
  func.func @transform_5(%arg0: i32) -> (i32, i32) {
    %c0_i32 = arith.constant 0 : i32
    %c0_i32_0 = arith.constant 0 : i32
    %c0_i32_1 = arith.constant 0 : i32
    return %c0_i32, %c0_i32_0 : i32, i32
  }
  func.func @transform_6(%arg0: i32) -> (i32, i32) {
    %c0_i32 = arith.constant 0 : i32
    %c0_i32_0 = arith.constant 0 : i32
    %c0_i32_1 = arith.constant 0 : i32
    return %c0_i32, %c0_i32_0 : i32, i32
  }
  func.func @transform_7(%arg0: i32) -> (i32, i32, i32) {
    %c0_i32 = arith.constant 0 : i32
    %c0_i32_0 = arith.constant 0 : i32
    %c0_i32_1 = arith.constant 0 : i32
    return %arg0, %c0_i32, %c0_i32_0 : i32, i32, i32
  }
}

</mosaic_0001>

<llo_original>
// kernel: signet_forward.2
$region0: #{signet_forward.2}
  #allocation0 [shape = 'u32[]', space=smem, size = 0x4, offset = 0x4, fixed_abs, tag = 'smem constant byte address 0x4 - core index']
  #allocation1 [shape = 'u32[144,128]{1,0:T(1,128)}', space=vmem, size = 0x12000, scoped, tag = 'internal scratch']
  %s0 = inlined_call_operand.vmem [shape: f32[16,20], index: 0, kind: input, shape index: {}]
  %s1 = inlined_call_operand.vmem [shape: f32[20,64], index: 1, kind: input, shape index: {}]
  %s2 = inlined_call_operand.vmem [shape: f32[1,64], index: 2, kind: input, shape index: {}]
  %s3 = inlined_call_operand.vmem [shape: f32[64,8], index: 3, kind: input, shape index: {}]
  %s4 = inlined_call_operand.vmem [shape: f32[1,8], index: 4, kind: input, shape index: {}]
  %s5 = inlined_call_operand.vmem [shape: f32[16,8], index: 5, kind: output, shape index: {}]
  %s6 = sld [smem:[#allocation0]]
  $region30: #{signet_forward.2} parent=0
    _
  %s8 = ssub.s32 1, %s6
  %s9 = scalar_select 0, %s8, %s6
  // Predicated region
  $region2: #{signet_forward.2} parent=0 // pred_check
    _
  $region3: #{signet_forward.2} parent=0 // pred_check_branch
    %11 = sbr.rel (0) target = $region5
  $region4: #{signet_forward.2} parent=0 // pred_region
    _
  $region5: #{signet_forward.2} parent=0 // pred_fallthru
    _
  // Predicated region
  $region6: #{signet_forward.2} parent=0 // pred_check
    _
  $region7: #{signet_forward.2} parent=0 // pred_check_branch
    %13 = sbr.rel (0) target = $region9
  $region8: #{signet_forward.2} parent=0 // pred_region
    _
  $region9: #{signet_forward.2} parent=0 // pred_fallthru
    _
  // Predicated region
  $region10: #{signet_forward.2} parent=0 // pred_check
    _
  $region11: #{signet_forward.2} parent=0 // pred_check_branch
    %15 = sbr.rel (0) target = $region13
  $region12: #{signet_forward.2} parent=0 // pred_region
    _
  $region13: #{signet_forward.2} parent=0 // pred_fallthru
    _
  // Predicated region
  $region14: #{signet_forward.2} parent=0 // pred_check
    _
  $region15: #{signet_forward.2} parent=0 // pred_check_branch
    %17 = sbr.rel (0) target = $region17
  $region16: #{signet_forward.2} parent=0 // pred_region
    _
  $region17: #{signet_forward.2} parent=0 // pred_fallthru
    _
  // Predicated region
  $region18: #{signet_forward.2} parent=0 // pred_check
    _
  $region19: #{signet_forward.2} parent=0 // pred_check_branch
    %19 = sbr.rel (0) target = $region21
  $region20: #{signet_forward.2} parent=0 // pred_region
    _
  $region21: #{signet_forward.2} parent=0 // pred_fallthru
    _
  %v20 = vld [vmem:[%s0] sm:$0xff]
  %v21 = vld [vmem:[%s0 + $0x8] sm:$0xff]
  %v22 = vld [vmem:[%s1] sm:$0xff]
  %v23 = vld [vmem:[%s1 + $0x8] sm:$0xff]
  %v24 = vld [vmem:[%s1 + $0x10] sm:$0xf]
  %v25 = vld [vmem:[%s2] sm:$0x1]
  %v27 = vlaneseq
  %v28 = vshrl.u32 %v27, 7
  %v29 = vsub.s32 0, %v28
  %v30 = vrot.slane %v25, %v29
  %vm32 = vcmask 162816
  %v34 = vsel %vm32, %v20, 0
  %v37 = vsel %vm32, %v21, 0
  %vm39 = vcmask 1043456
  %v41 = vsel %vm39, %v24, 0
  %43 = vmatprep.subr.mxu0 0.0
  %44 = vmatpush1.msra.mxu0 0.0
  %45 = vmatprep.subr.mxu0 0.0
  %46 = vmatpush1.msra.mxu0 0.0
  %47 = vmatprep.subr.mxu0 0.0
  %48 = vmatpush1.msra.mxu0 0.0
  %49 = vmatprep.subr.mxu0 0.0
  %50 = vmatpush1.msra.mxu0 0.0
  %51 = vmatprep.subr.mxu0 0.0
  %52 = vmatpush1.msra.mxu0 0.0
  %53 = vmatprep.subr.mxu0 0.0
  %54 = vmatpush1.msra.mxu0 0.0
  %55 = vmatprep.subr.mxu0 0.0
  %56 = vmatpush1.msra.mxu0 0.0
  %57 = vmatprep.subr.mxu0 0.0
  %58 = vmatpush1.msra.mxu0 0.0
  %59 = vmatprep.subr.mxu0 0.0
  %60 = vmatpush1.msra.mxu0 0.0
  %61 = vmatprep.subr.mxu0 0.0
  %62 = vmatpush1.msra.mxu0 0.0
  %63 = vmatprep.subr.mxu0 0.0
  %64 = vmatpush1.msra.mxu0 0.0
  %65 = vmatprep.subr.mxu0 0.0
  %66 = vmatpush1.msra.mxu0 0.0
  %67 = vmatprep.subr.mxu0 0.0
  %68 = vmatpush1.msra.mxu0 0.0
  %69 = vmatprep.subr.mxu0 0.0
  %70 = vmatpush1.msra.mxu0 %v41
  %71 = vmatprep.subr.mxu0 0.0
  %72 = vmatpush1.msra.mxu0 %v23
  %73 = vmatprep.subr.mxu0 0.0
  %74 = vmatpush1.msra.mxu0 %v22
  %75 = vmatprep.subr.mxu0 0.0
  %76 = vmatpush2.msra.mxu0 0.0
  %77 = vmatprep.subr.mxu0 0.0
  %78 = vmatpush2.msra.mxu0 0.0
  %79 = vmatprep.subr.mxu0 0.0
  %80 = vmatpush2.msra.mxu0 0.0
  %81 = vmatprep.subr.mxu0 0.0
  %82 = vmatpush2.msra.mxu0 0.0
  %83 = vmatprep.subr.mxu0 0.0
  %84 = vmatpush2.msra.mxu0 0.0
  %85 = vmatprep.subr.mxu0 0.0
  %86 = vmatpush2.msra.mxu0 0.0
  %87 = vmatprep.subr.mxu0 0.0
  %88 = vmatpush2.msra.mxu0 0.0
  %89 = vmatprep.subr.mxu0 0.0
  %90 = vmatpush2.msra.mxu0 0.0
  %91 = vmatprep.subr.mxu0 0.0
  %92 = vmatpush2.msra.mxu0 0.0
  %93 = vmatprep.subr.mxu0 0.0
  %94 = vmatpush2.msra.mxu0 0.0
  %95 = vmatprep.subr.mxu0 0.0
  %96 = vmatpush2.msra.mxu0 0.0
  %97 = vmatprep.subr.mxu0 0.0
  %98 = vmatpush2.msra.mxu0 0.0
  %99 = vmatprep.subr.mxu0 0.0
  %100 = vmatpush2.msra.mxu0 0.0
  %101 = vmatprep.subr.mxu0 0.0
  %102 = vmatpush2.msra.mxu0 0.0
  %103 = vmatprep.subr.mxu0 0.0
  %104 = vmatpush2.msra.mxu0 0.0
  %105 = vmatprep.subr.mxu0 0.0
  %106 = vmatpush2.msra.mxu0 0.0
  %107 = vmatprep.mubr.f32.mxu0 0.0
  %108 = vmatmul.mubr.f32.gmra.mxu0 %v34
  %v109 = vpop.f32.mrf.mxu0
  %v110 = vadd.f32 %v30, %v109
  %v111 = vpop.f32.mrf.mxu0
  %112 = vmatprep.mubr.f32.mxu0 0.0
  %113 = vmatmul.mubr.f32.gmra.mxu0 %v37
  %v114 = vpop.f32.mrf.mxu0
  %v115 = vadd.f32 %v30, %v114
  %v116 = vpop.f32.mrf.mxu0
  %117 = vdwg.mxu0
  %v118 = vmul.f32 %v110, 0.01
  %v119 = vmul.f32 %v115, 0.01
  %v120 = vmax.f32 %v110, %v118
  %v121 = vmax.f32 %v115, %v119
  %v122 = vld [vmem:[%s3] sm:$0xff]
  %v123 = vld [vmem:[%s3 + $0x8] sm:$0xff]
  %v124 = vld [vmem:[%s3 + $0x10] sm:$0xff]
  %v125 = vld [vmem:[%s3 + $0x18] sm:$0xff]
  %v126 = vld [vmem:[%s3 + $0x20] sm:$0xff]
  %v127 = vld [vmem:[%s3 + $0x28] sm:$0xff]
  %v128 = vld [vmem:[%s3 + $0x30] sm:$0xff]
  %v129 = vld [vmem:[%s3 + $0x38] sm:$0xff]
  %v130 = vld [vmem:[%s4] sm:$0x1]
  %v132 = vlaneseq
  %v133 = vshrl.u32 %v132, 7
  %v134 = vsub.s32 0, %v133
  %v135 = vrot.slane %v130, %v134
  %vm137 = vcmask 523264
  %v139 = vsel %vm137, %v120, 0
  %v142 = vsel %vm137, %v121, 0
  %144 = vmatprep.subr.mxu0 0.0
  %145 = vmatpush1.msra.mxu0 0.0
  %146 = vmatprep.subr.mxu0 0.0
  %147 = vmatpush1.msra.mxu0 0.0
  %148 = vmatprep.subr.mxu0 0.0
  %149 = vmatpush1.msra.mxu0 0.0
  %150 = vmatprep.subr.mxu0 0.0
  %151 = vmatpush1.msra.mxu0 0.0
  %152 = vmatprep.subr.mxu0 0.0
  %153 = vmatpush1.msra.mxu0 0.0
  %154 = vmatprep.subr.mxu0 0.0
  %155 = vmatpush1.msra.mxu0 0.0
  %156 = vmatprep.subr.mxu0 0.0
  %157 = vmatpush1.msra.mxu0 0.0
  %158 = vmatprep.subr.mxu0 0.0
  %159 = vmatpush1.msra.mxu0 0.0
  %160 = vmatprep.subr.mxu0 0.0
  %161 = vmatpush1.msra.mxu0 %v129
  %162 = vmatprep.subr.mxu0 0.0
  %163 = vmatpush1.msra.mxu0 %v128
  %164 = vmatprep.subr.mxu0 0.0
  %165 = vmatpush1.msra.mxu0 %v127
  %166 = vmatprep.subr.mxu0 0.0
  %167 = vmatpush1.msra.mxu0 %v126
  %168 = vmatprep.subr.mxu0 0.0
  %169 = vmatpush1.msra.mxu0 %v125
  %170 = vmatprep.subr.mxu0 0.0
  %171 = vmatpush1.msra.mxu0 %v124
  %172 = vmatprep.subr.mxu0 0.0
  %173 = vmatpush1.msra.mxu0 %v123
  %174 = vmatprep.subr.mxu0 0.0
  %175 = vmatpush1.msra.mxu0 %v122
  %176 = vmatprep.subr.mxu0 0.0
  %177 = vmatpush2.msra.mxu0 0.0
  %178 = vmatprep.subr.mxu0 0.0
  %179 = vmatpush2.msra.mxu0 0.0
  %180 = vmatprep.subr.mxu0 0.0
  %181 = vmatpush2.msra.mxu0 0.0
  %182 = vmatprep.subr.mxu0 0.0
  %183 = vmatpush2.msra.mxu0 0.0
  %184 = vmatprep.subr.mxu0 0.0
  %185 = vmatpush2.msra.mxu0 0.0
  %186 = vmatprep.subr.mxu0 0.0
  %187 = vmatpush2.msra.mxu0 0.0
  %188 = vmatprep.subr.mxu0 0.0
  %189 = vmatpush2.msra.mxu0 0.0
  %190 = vmatprep.subr.mxu0 0.0
  %191 = vmatpush2.msra.mxu0 0.0
  %192 = vmatprep.subr.mxu0 0.0
  %193 = vmatpush2.msra.mxu0 0.0
  %194 = vmatprep.subr.mxu0 0.0
  %195 = vmatpush2.msra.mxu0 0.0
  %196 = vmatprep.subr.mxu0 0.0
  %197 = vmatpush2.msra.mxu0 0.0
  %198 = vmatprep.subr.mxu0 0.0
  %199 = vmatpush2.msra.mxu0 0.0
  %200 = vmatprep.subr.mxu0 0.0
  %201 = vmatpush2.msra.mxu0 0.0
  %202 = vmatprep.subr.mxu0 0.0
  %203 = vmatpush2.msra.mxu0 0.0
  %204 = vmatprep.subr.mxu0 0.0
  %205 = vmatpush2.msra.mxu0 0.0
  %206 = vmatprep.subr.mxu0 0.0
  %207 = vmatpush2.msra.mxu0 0.0
  %208 = vmatprep.mubr.f32.mxu0 0.0
  %209 = vmatmul.mubr.f32.gmra.mxu0 %v139
  %v210 = vpop.f32.mrf.mxu0
  %v211 = vadd.f32 %v135, %v210
  %v212 = vpop.f32.mrf.mxu0
  %213 = vmatprep.mubr.f32.mxu0 0.0
  %214 = vmatmul.mubr.f32.gmra.mxu0 %v142
  %v215 = vpop.f32.mrf.mxu0
  %v216 = vadd.f32 %v135, %v215
  %v217 = vpop.f32.mrf.mxu0
  %218 = vdwg.mxu0
  %vm219 = vcmask 64512
  %220 = vst.msk [vmem:[%s5] sm:$0xff] %vm219, %v211
  %221 = vst.msk [vmem:[%s5 + $0x8] sm:$0xff] %vm219, %v216
  // Predicated region
  $region22: #{signet_forward.2} parent=0 // pred_check
    _
  $region23: #{signet_forward.2} parent=0 // pred_check_branch
    %223 = sbr.rel (0) target = $region25
  $region24: #{signet_forward.2} parent=0 // pred_region
    _
  $region25: #{signet_forward.2} parent=0 // pred_fallthru
    _
  // Predicated region
  $region26: #{signet_forward.2} parent=0 // pred_check
    _
  $region27: #{signet_forward.2} parent=0 // pred_check_branch
    %225 = sbr.rel (0) target = $region29
  $region28: #{signet_forward.2} parent=0 // pred_region
    _
  $region29: #{signet_forward.2} parent=0 // pred_fallthru
    _

// kernel: signet_forward.3
$region0: #{signet_forward.3}
  #allocation0 [shape = 'u32[]', space=smem, size = 0x4, offset = 0x4, fixed_abs, tag = 'smem constant byte address 0x4 - core index']
  #allocation1 [shape = 'u32[144,128]{1,0:T(1,128)}', space=vmem, size = 0x12000, scoped, tag = 'internal scratch']
  #allocation2 [shape = 'f32[29,1]{1,0:T(8,128)}', space=vmem, size = 0x4000, scoped, tag = 'scratch operand']
  #allocation3 [shape = 'f32[29,29]{1,0:T(8,128)}', space=vmem, size = 0x4000, scoped, tag = 'scratch operand']
  #allocation4 [shape = 'f32[29,841]{1,0:T(8,128)}', space=vmem, size = 0x1c000, scoped, tag = 'scratch operand']
  #allocation5 [shape = 'f32[1,29]{1,0:T(1,128)}', space=vmem, size = 0x200, scoped, tag = 'scratch operand']
  #allocation6 [shape = 'f32[1,1]{1,0:T(1,128)S(1)}', space=vmem, size = 0x200, scoped, tag = 'scoped memory for signet_forward.3']
  %s0 = inlined_call_operand.vmem [shape: f32[2,8,29], index: 0, kind: input, shape index: {}]
  %s1 = inlined_call_operand.vmem [shape: f32[29,841], index: 1, kind: input, shape index: {}]
  %s2 = inlined_call_operand.vmem [shape: f32[29,841], index: 2, kind: input, shape index: {}]
  %s3 = inlined_call_operand.vmem [shape: f32[29,1], index: 3, kind: input, shape index: {}]
  %s4 = inlined_call_operand.vmem [shape: f32[29,29], index: 4, kind: input, shape index: {}]
  %s5 = inlined_call_operand.vmem [shape: f32[29,841], index: 5, kind: input, shape index: {}]
  %s6 = inlined_call_operand.<no memory space> [shape: f32[1,1], index: 6, kind: input, shape index: {}]
  %s7 = inlined_call_operand.hbm [shape: f32[2,1,8], index: 7, kind: output, shape index: {}]
  %s8 = sld [smem:[#allocation0]]
  $region68: #{signet_forward.3} parent=0
    _
  %s10 = ssub.s32 1, %s8
  %s11 = scalar_select 0, %s10, %s8
  %v12 = vstv %s6
  %13 = vst [vmem:[#allocation6] sm:$0x1] %v12
  $region1: #{signet_forward.3} parent=0
    #allocation7 [shape = 'u8[1024]{0}', space=vmem, size = 0x400, scoped, tag = 'output window, operand 0']
    #allocation8 [shape = 's32[2]{0}', space=sflag, size = 0x8, scoped, tag = 'scoped memory for signet_forward.3']
    %14 = vsyncpa [#allocation8], 0
    %s15 = scalar_lea.sflag [#allocation8], 1
    %16 = vsyncpa %s15, 0
    loop: start=0, step=1, limit=4
    $region2: #{signet_forward.3} parent=1 // loop_pre_header
      _
    $region3: #{signet_forward.3} parent=1 // loop_header
      %s18 = sphi 0, %s22
      %p19 = scmp.ge.s32.totalorder %s18, 4
      %s28 = sphi 0, %s30
      %s31 = sphi 0, %s28
      %s32 = sphi 0, %s31
      %s48 = sphi 0, %s32
      %s52 = sphi 0, %s52
      %s54 = sphi 0, %s52
      %s55 = sphi 0, %s54
      %s69 = sphi 0, %s55
      %s73 = sphi 0, %s73
      %s75 = sphi 0, %s73
      %s76 = sphi 0, %s75
      %s90 = sphi 0, %s76
      %s94 = sphi 0, %s94
      %s96 = sphi 0, %s94
      %s97 = sphi 0, %s96
      %s111 = sphi 0, %s97
      %s115 = sphi 0, %s115
      %s117 = sphi 0, %s115
      %s118 = sphi 0, %s117
      %s132 = sphi 0, %s118
      %s136 = sphi 0, %s136
      %s138 = sphi 0, %s136
      %s139 = sphi 0, %s138
      %s153 = sphi 0, %s139
      %s157 = sphi 0, %s157
      %s159 = sphi 0, %s157
      %s160 = sphi 0, %s159
      %s174 = sphi 0, %s160
      %s180 = sphi 0, %s182
      %s183 = sphi 0, %s180
      %s184 = sphi 0, %s183
      %s200 = sphi 0, %s184
    $region4: #{signet_forward.3} parent=1 // loop_header_branch
      %21 = sbr.rel (%p19) target = $region8
    $region5: #{signet_forward.3} parent=1 // loop_body
      %s23 = ssub.s32 %s18, 1
      %s24 = ssub.s32 %s18, 2
      %s25 = sadd.s32 %s18, 1
      %s26 = ssub.s32 %s18, %s25
      %p27 = scmp.eq.s32.totalorder %s26, 0
      %s29 = sadd.s32 %s28, 1
      %s30 = scalar_select %p27, %s28, %s29
      %p33 = pneg %p27
      %p34 = scmp.eq.s32.totalorder %s18, 1
      %p35 = por %p33, %p34
      %p36 = scmp.ne.s32.totalorder %s28, %s31
      %p37 = scmp.eq.s32.totalorder %s18, 0
      %p38 = por %p36, %p37
      %p39 = scmp.ne.s32.totalorder %s28, %s31
      %p40 = scmp.eq.s32.totalorder %s23, 1
      %p41 = por %p39, %p40
      %p42 = scmp.ne.s32.totalorder %s31, %s32
      %p43 = scmp.eq.s32.totalorder %s23, 0
      %p44 = por %p42, %p43
      %p45 = scmp.ne.s32.totalorder %s31, %s32
      %p46 = scmp.eq.s32.totalorder %s24, 1
      %p47 = por %p45, %p46
      %p49 = scmp.ne.s32.totalorder %s32, %s48
      %p50 = scmp.eq.s32.totalorder %s24, 0
      %p51 = por %p49, %p50
      %s53 = sadd.s32 %s52, 1
      %p56 = scmp.eq.s32.totalorder %s18, 1
      %p57 = scmp.ne.s32.totalorder %s52, %s54
      %p58 = scmp.eq.s32.totalorder %s18, 0
      %p59 = por %p57, %p58
      %p60 = scmp.ne.s32.totalorder %s52, %s54
      %p61 = scmp.eq.s32.totalorder %s23, 1
      %p62 = por %p60, %p61
      %p63 = scmp.ne.s32.totalorder %s54, %s55
      %p64 = scmp.eq.s32.totalorder %s23, 0
      %p65 = por %p63, %p64
      %p66 = scmp.ne.s32.totalorder %s54, %s55
      %p67 = scmp.eq.s32.totalorder %s24, 1
      %p68 = por %p66, %p67
      %p70 = scmp.ne.s32.totalorder %s55, %s69
      %p71 = scmp.eq.s32.totalorder %s24, 0
      %p72 = por %p70, %p71
      %s74 = sadd.s32 %s73, 1
      %p77 = scmp.eq.s32.totalorder %s18, 1
      %p78 = scmp.ne.s32.totalorder %s73, %s75
      %p79 = scmp.eq.s32.totalorder %s18, 0
      %p80 = por %p78, %p79
      %p81 = scmp.ne.s32.totalorder %s73, %s75
      %p82 = scmp.eq.s32.totalorder %s23, 1
      %p83 = por %p81, %p82
      %p84 = scmp.ne.s32.totalorder %s75, %s76
      %p85 = scmp.eq.s32.totalorder %s23, 0
      %p86 = por %p84, %p85
      %p87 = scmp.ne.s32.totalorder %s75, %s76
      %p88 = scmp.eq.s32.totalorder %s24, 1
      %p89 = por %p87, %p88
      %p91 = scmp.ne.s32.totalorder %s76, %s90
      %p92 = scmp.eq.s32.totalorder %s24, 0
      %p93 = por %p91, %p92
      %s95 = sadd.s32 %s94, 1
      %p98 = scmp.eq.s32.totalorder %s18, 1
      %p99 = scmp.ne.s32.totalorder %s94, %s96
      %p100 = scmp.eq.s32.totalorder %s18, 0
      %p101 = por %p99, %p100
      %p102 = scmp.ne.s32.totalorder %s94, %s96
      %p103 = scmp.eq.s32.totalorder %s23, 1
      %p104 = por %p102, %p103
      %p105 = scmp.ne.s32.totalorder %s96, %s97
      %p106 = scmp.eq.s32.totalorder %s23, 0
      %p107 = por %p105, %p106
      %p108 = scmp.ne.s32.totalorder %s96, %s97
      %p109 = scmp.eq.s32.totalorder %s24, 1
      %p110 = por %p108, %p109
      %p112 = scmp.ne.s32.totalorder %s97, %s111
      %p113 = scmp.eq.s32.totalorder %s24, 0
      %p114 = por %p112, %p113
      %s116 = sadd.s32 %s115, 1
      %p119 = scmp.eq.s32.totalorder %s18, 1
      %p120 = scmp.ne.s32.totalorder %s115, %s117
      %p121 = scmp.eq.s32.totalorder %s18, 0
      %p122 = por %p120, %p121
      %p123 = scmp.ne.s32.totalorder %s115, %s117
      %p124 = scmp.eq.s32.totalorder %s23, 1
      %p125 = por %p123, %p124
      %p126 = scmp.ne.s32.totalorder %s117, %s118
      %p127 = scmp.eq.s32.totalorder %s23, 0
      %p128 = por %p126, %p127
      %p129 = scmp.ne.s32.totalorder %s117, %s118
      %p130 = scmp.eq.s32.totalorder %s24, 1
      %p131 = por %p129, %p130
      %p133 = scmp.ne.s32.totalorder %s118, %s132
      %p134 = scmp.eq.s32.totalorder %s24, 0
      %p135 = por %p133, %p134
      %s137 = sadd.s32 %s136, 1
      %p140 = scmp.eq.s32.totalorder %s18, 1
      %p141 = scmp.ne.s32.totalorder %s136, %s138
      %p142 = scmp.eq.s32.totalorder %s18, 0
      %p143 = por %p141, %p142
      %p144 = scmp.ne.s32.totalorder %s136, %s138
      %p145 = scmp.eq.s32.totalorder %s23, 1
      %p146 = por %p144, %p145
      %p147 = scmp.ne.s32.totalorder %s138, %s139
      %p148 = scmp.eq.s32.totalorder %s23, 0
      %p149 = por %p147, %p148
      %p150 = scmp.ne.s32.totalorder %s138, %s139
      %p151 = scmp.eq.s32.totalorder %s24, 1
      %p152 = por %p150, %p151
      %p154 = scmp.ne.s32.totalorder %s139, %s153
      %p155 = scmp.eq.s32.totalorder %s24, 0
      %p156 = por %p154, %p155
      %s158 = sadd.s32 %s157, 1
      %p161 = scmp.eq.s32.totalorder %s18, 1
      %p162 = scmp.ne.s32.totalorder %s157, %s159
      %p163 = scmp.eq.s32.totalorder %s18, 0
      %p164 = por %p162, %p163
      %p165 = scmp.ne.s32.totalorder %s157, %s159
      %p166 = scmp.eq.s32.totalorder %s23, 1
      %p167 = por %p165, %p166
      %p168 = scmp.ne.s32.totalorder %s159, %s160
      %p169 = scmp.eq.s32.totalorder %s23, 0
      %p170 = por %p168, %p169
      %p171 = scmp.ne.s32.totalorder %s159, %s160
      %p172 = scmp.eq.s32.totalorder %s24, 1
      %p173 = por %p171, %p172
      %p175 = scmp.ne.s32.totalorder %s160, %s174
      %p176 = scmp.eq.s32.totalorder %s24, 0
      %p177 = por %p175, %p176
      %s178 = ssub.s32 %s18, %s25
      %p179 = scmp.eq.s32.totalorder %s178, 0
      %s181 = sadd.s32 %s180, 1
      %s182 = scalar_select %p179, %s180, %s181
      %p185 = pneg %p179
      %p186 = scmp.eq.s32.totalorder %s18, 1
      %p187 = por %p185, %p186
      %p188 = scmp.ne.s32.totalorder %s180, %s183
      %p189 = scmp.eq.s32.totalorder %s18, 0
      %p190 = por %p188, %p189
      %p191 = scmp.ne.s32.totalorder %s180, %s183
      %p192 = scmp.eq.s32.totalorder %s23, 1
      %p193 = por %p191, %p192
      %p194 = scmp.ne.s32.totalorder %s183, %s184
      %p195 = scmp.eq.s32.totalorder %s23, 0
      %p196 = por %p194, %p195
      %p197 = scmp.ne.s32.totalorder %s183, %s184
      %p198 = scmp.eq.s32.totalorder %s24, 1
      %p199 = por %p197, %p198
      %p201 = scmp.ne.s32.totalorder %s184, %s200
      %p202 = scmp.eq.s32.totalorder %s24, 0
      %p203 = por %p201, %p202
      %p204 = scmp.le.s32.totalorder 1, %s18
      %p205 = scmp.lt.s32.totalorder %s18, 3
      %p206 = pnand %p204, %p205
      %p207 = pneg %p206
      // Predicated region
      $region9: #{signet_forward.3} parent=5 // pred_check
        _
      $region10: #{signet_forward.3} parent=5 // pred_check_branch
        %209 = sbr.rel (%p206) target = $region12
      $region11: #{signet_forward.3} parent=5 // pred_region
        %s210 = ssub.s32 %s18, 1
        // Predicated region
        $region13: #{signet_forward.3} parent=11 // pred_check
          %p211 = pneg %p65
        $region14: #{signet_forward.3} parent=11 // pred_check_branch
          %213 = sbr.rel (%p211) target = $region16
        $region15: #{signet_forward.3} parent=11 // pred_region
          _
        $region16: #{signet_forward.3} parent=11 // pred_fallthru
          _
        // Predicated region
        $region17: #{signet_forward.3} parent=11 // pred_check
          %p214 = pneg %p86
        $region18: #{signet_forward.3} parent=11 // pred_check_branch
          %216 = sbr.rel (%p214) target = $region20
        $region19: #{signet_forward.3} parent=11 // pred_region
          _
        $region20: #{signet_forward.3} parent=11 // pred_fallthru
          _
        // Predicated region
        $region21: #{signet_forward.3} parent=11 // pred_check
          %p217 = pneg %p107
        $region22: #{signet_forward.3} parent=11 // pred_check_branch
          %219 = sbr.rel (%p217) target = $region24
        $region23: #{signet_forward.3} parent=11 // pred_region
          _
        $region24: #{signet_forward.3} parent=11 // pred_fallthru
          _
        // Predicated region
        $region25: #{signet_forward.3} parent=11 // pred_check
          %p220 = pneg %p128
        $region26: #{signet_forward.3} parent=11 // pred_check_branch
          %222 = sbr.rel (%p220) target = $region28
        $region27: #{signet_forward.3} parent=11 // pred_region
          _
        $region28: #{signet_forward.3} parent=11 // pred_fallthru
          _
        // Predicated region
        $region29: #{signet_forward.3} parent=11 // pred_check
          %p223 = pneg %p149
        $region30: #{signet_forward.3} parent=11 // pred_check_branch
          %225 = sbr.rel (%p223) target = $region32
        $region31: #{signet_forward.3} parent=11 // pred_region
          _
        $region32: #{signet_forward.3} parent=11 // pred_fallthru
          _
        // Predicated region
        $region33: #{signet_forward.3} parent=11 // pred_check
          %p226 = pneg %p170
        $region34: #{signet_forward.3} parent=11 // pred_check_branch
          %228 = sbr.rel (%p226) target = $region36
        $region35: #{signet_forward.3} parent=11 // pred_region
          _
        $region36: #{signet_forward.3} parent=11 // pred_fallthru
          _
      $region12: #{signet_forward.3} parent=5 // pred_fallthru
        _
      %p229 = scmp.lt.s32.totalorder %s18, 2
      // Predicated region
      $region37: #{signet_forward.3} parent=5 // pred_check
        %p230 = pneg %p229
      $region38: #{signet_forward.3} parent=5 // pred_check_branch
        %232 = sbr.rel (%p230) target = $region40
      $region39: #{signet_forward.3} parent=5 // pred_region
        // Predicated region
        $region41: #{signet_forward.3} parent=39 // pred_check
          %p233 = pneg %p38
        $region42: #{signet_forward.3} parent=39 // pred_check_branch
          %235 = sbr.rel (%p233) target = $region44
        $region43: #{signet_forward.3} parent=39 // pred_region
          %p236 = scmp.lt.s32.totalorder %s18, 1
          %s237 = scalar_select %p236, %s18, 1
          %s238 = smul.addr %s237, 8
          %s239 = scalar_lea.vmem %s0, %s238
        $region44: #{signet_forward.3} parent=39 // pred_fallthru
          _
      $region40: #{signet_forward.3} parent=5 // pred_fallthru
        _
      %p240 = scmp.le.s32.totalorder 1, %s18
      %p241 = scmp.lt.s32.totalorder %s18, 3
      %p242 = pnand %p240, %p241
      %p243 = pneg %p242
      // Predicated region
      $region45: #{signet_forward.3} parent=5 // pred_check
        _
      $region46: #{signet_forward.3} parent=5 // pred_check_branch
        %245 = sbr.rel (%p242) target = $region48
      $region47: #{signet_forward.3} parent=5 // pred_region
        %s246 = ssub.s32 %s18, 1
        %p247 = scmp.lt.s32.totalorder %s23, 1
        %s248 = scalar_select %p247, %s23, 1
        %s249 = smul.addr %s248, 8
        %s250 = scalar_lea.vmem %s0, %s249
        %p251 = pneg %p44
        %p252 = pneg %p41
        %p253 = pneg %p65
        %p254 = pneg %p62
        %p255 = pneg %p86
        %p256 = pneg %p83
        %p257 = pneg %p107
        %p258 = pneg %p104
        %p259 = pneg %p128
        %p260 = pneg %p125
        %p261 = pneg %p149
        %p262 = pneg %p146
        %p263 = pneg %p170
        %p264 = pneg %p167
        %p265 = pneg %p196
        %p266 = pneg %p193
        %s267 = sand.u32 %s183, 1
        %s268 = scalar_lea.sflag [#allocation8], %s267
        %s269 = sand.u32 %s183, 1
        %s270 = scalar_lea.vmem [#allocation7], %s269
        %p271 = scmp.lt.s32.totalorder %s23, 1
        %s272 = scalar_select %p271, %s23, 1
        %s273 = smul.addr %s272, 8
        %s274 = scalar_lea.vmem %s0, %s273
        %vm275 = vcmask 7168
        %276 = vst.msk [vmem:[#allocation2] sm:$0xff] %vm275, 0.0
        %277 = vst.msk [vmem:[#allocation2 + $0x8] sm:$0xff] %vm275, 0.0
        %278 = vst.msk [vmem:[#allocation2 + $0x10] sm:$0xff] %vm275, 0.0
        %vm279 = vcmask 4096
        %280 = vst.msk [vmem:[#allocation2 + $0x18] sm:$0x1f] %vm279, 0.0
        %vm281 = vcmask 236544
        %282 = vst.msk [vmem:[#allocation3] sm:$0xff] %vm281, 0.0
        %283 = vst.msk [vmem:[#allocation3 + $0x8] sm:$0xff] %vm281, 0.0
        %284 = vst.msk [vmem:[#allocation3 + $0x10] sm:$0xff] %vm281, 0.0
        %vm285 = vcmask 233472
        %286 = vst.msk [vmem:[#allocation3 + $0x18] sm:$0x1f] %vm285, 0.0
        %287 = vst [vmem:[#allocation4] sm:$0xff] 0.0
        %288 = vst [vmem:[#allocation4 + $0x8] sm:$0xff] 0.0
        %289 = vst [vmem:[#allocation4 + $0x10] sm:$0xff] 0.0
        %290 = vst [vmem:[#allocation4 + $0x18] sm:$0xff] 0.0
        %291 = vst [vmem:[#allocation4 + $0x20] sm:$0xff] 0.0
        %292 = vst [vmem:[#allocation4 + $0x28] sm:$0xff] 0.0
        %vm293 = vcmask 596992
        %294 = vst.msk [vmem:[#allocation4 + $0x30] sm:$0xff] %vm293, 0.0
        %295 = vst [vmem:[#allocation4 + $0x38] sm:$0xff] 0.0
        %296 = vst [vmem:[#allocation4 + $0x40] sm:$0xff] 0.0
        %297 = vst [vmem:[#allocation4 + $0x48] sm:$0xff] 0.0
        %298 = vst [vmem:[#allocation4 + $0x50] sm:$0xff] 0.0
        %299 = vst [vmem:[#allocation4 + $0x58] sm:$0xff] 0.0
        %300 = vst [vmem:[#allocation4 + $0x60] sm:$0xff] 0.0
        %301 = vst.msk [vmem:[#allocation4 + $0x68] sm:$0xff] %vm293, 0.0
        %302 = vst [vmem:[#allocation4 + $0x70] sm:$0xff] 0.0
        %303 = vst [vmem:[#allocation4 + $0x78] sm:$0xff] 0.0
        %304 = vst [vmem:[#allocation4 + $0x80] sm:$0xff] 0.0
        %305 = vst [vmem:[#allocation4 + $0x88] sm:$0xff] 0.0
        %306 = vst [vmem:[#allocation4 + $0x90] sm:$0xff] 0.0
        %307 = vst [vmem:[#allocation4 + $0x98] sm:$0xff] 0.0
        %308 = vst.msk [vmem:[#allocation4 + $0xa0] sm:$0xff] %vm293, 0.0
        %309 = vst [vmem:[#allocation4 + $0xa8] sm:$0x1f] 0.0
        %310 = vst [vmem:[#allocation4 + $0xb0] sm:$0x1f] 0.0
        %311 = vst [vmem:[#allocation4 + $0xb8] sm:$0x1f] 0.0
        %312 = vst [vmem:[#allocation4 + $0xc0] sm:$0x1f] 0.0
        %313 = vst [vmem:[#allocation4 + $0xc8] sm:$0x1f] 0.0
        %314 = vst [vmem:[#allocation4 + $0xd0] sm:$0x1f] 0.0
        %vm315 = vcmask 593920
        %316 = vst.msk [vmem:[#allocation4 + $0xd8] sm:$0x1f] %vm315, 0.0
        %vm317 = vcmask 229376
        %318 = vst.msk [vmem:[#allocation5] sm:$0x1] %vm317, 0.0
        %vm319 = vcmask 57344
        %320 = vst.msk [vmem:[%s270] sm:$0x1] %vm319, 0.0
        %v321 = vlaneseq
        %v322 = vshrl.u32 %v321, 7
        %v323 = vadd.s32 %v322, 8
        %v324 = vadd.s32 %v322, 16
        %v325 = vadd.s32 %v322, 24
        %v326 = vlaneseq
        %v327 = vand.u32 %v326, 127
        %vm328 = vcmp.eq.s32.totalorder %v322, %v327
        %vm329 = vcmp.eq.s32.totalorder %v323, %v327
        %vm330 = vcmp.eq.s32.totalorder %v324, %v327
        %vm331 = vcmp.eq.s32.totalorder %v325, %v327
        %v332 = vsel %vm328, 1, 0
        %v333 = vsel %vm329, 1, 0
        %v334 = vsel %vm330, 1, 0
        %v335 = vsel %vm331, 1, 0
        %v336 = vcvt.s32.f32 %v332
        %v337 = vcvt.s32.f32 %v333
        %v338 = vcvt.s32.f32 %v334
        %v339 = vcvt.s32.f32 %v335
        %v340 = vld [vmem:[#allocation6] sm:$0x1]
        loop: start=0, step=1, limit=8
        $region49: #{signet_forward.3} parent=47 // loop_pre_header
          _
        $region50: #{signet_forward.3} parent=47 // loop_header
          %s342 = sphi 0, %s346
          %p343 = scmp.ge.s32.totalorder %s342, 8
        $region51: #{signet_forward.3} parent=47 // loop_header_branch
          %345 = sbr.rel (%p343) target = $region55
        $region52: #{signet_forward.3} parent=47 // loop_body
          %s347 = scalar_lea.vmem %s274, %s342
          %v348 = vld [vmem:[%s347] sm:$0x1]
          %v349 = vld [vmem:[#allocation5] sm:$0x1]
          %v350 = vsub.f32 %v348, %v349
          %351 = vst.msk [vmem:[#allocation5] sm:$0x1] %vm317, %v348
          %v352 = vlaneseq
          %v353 = vshrl.u32 %v352, 7
          %v354 = vsub.s32 0, %v353
          %v355 = vrot.slane %v350, %v354
          %v356 = vmul.f32 %v355, %v336
          %v357 = vmul.f32 %v355, %v337
          %v358 = vmul.f32 %v355, %v338
          %v359 = vmul.f32 %v355, %v339
          %v360 = vsel %vm281, %v356, 0.0
          %361 = vadd.xlane.f32.xlu0 %v360
          %v362 = vpop.xlane.xlu0 %361
          %v363 = vsel %vm281, %v357, 0.0
          %364 = vadd.xlane.f32.xlu0 %v363
          %v365 = vpop.xlane.xlu0 %364
          %v366 = vsel %vm281, %v358, 0.0
          %367 = vadd.xlane.f32.xlu0 %v366
          %v368 = vpop.xlane.xlu0 %367
          %v369 = vsel %vm285, %v359, 0.0
          %370 = vadd.xlane.f32.xlu0 %v369
          %v371 = vpop.xlane.xlu0 %370
          %v372 = vld [vmem:[#allocation2] sm:$0xff]
          %v373 = vld [vmem:[#allocation2 + $0x8] sm:$0xff]
          %v374 = vld [vmem:[#allocation2 + $0x10] sm:$0xff]
          %v375 = vld [vmem:[#allocation2 + $0x18] sm:$0x1f]
          %v376 = vld [vmem:[#allocation3] sm:$0xff]
          %v377 = vld [vmem:[#allocation3 + $0x8] sm:$0xff]
          %v378 = vld [vmem:[#allocation3 + $0x10] sm:$0xff]
          %v379 = vld [vmem:[#allocation3 + $0x18] sm:$0x1f]
          %v380 = vmul.f32 %v372, 0.5
          %v381 = vmul.f32 %v373, 0.5
          %v382 = vmul.f32 %v374, 0.5
          %v383 = vmul.f32 %v375, 0.5
          %v384 = vmul.f32 %v362, 0.16666667
          %v385 = vmul.f32 %v365, 0.16666667
          %v386 = vmul.f32 %v368, 0.16666667
          %v387 = vmul.f32 %v371, 0.16666667
          %v388 = vadd.f32 %v380, %v384
          %v389 = vadd.f32 %v381, %v385
          %v390 = vadd.f32 %v382, %v386
          %v391 = vadd.f32 %v383, %v387
          %393 = vset.pattern.permute.xlu0 0
          %394 = vperm.xlu0 %393, %v388
          %v395 = vpop.permute.xlu0 %394
          %398 = vset.pattern.permute.xlu0 0
          %399 = vperm.xlu0 %398, %v389
          %v400 = vpop.permute.xlu0 %399
          %403 = vset.pattern.permute.xlu0 0
          %404 = vperm.xlu0 %403, %v390
          %v405 = vpop.permute.xlu0 %404
          %408 = vset.pattern.permute.xlu0 0
          %409 = vperm.xlu0 %408, %v391
          %v410 = vpop.permute.xlu0 %409
          %v412 = vmul.f32 %v395, %v355
          %v413 = vmul.f32 %v400, %v355
          %v414 = vmul.f32 %v405, %v355
          %v415 = vmul.f32 %v410, %v355
          %v416 = vadd.f32 %v376, %v412
          %v417 = vadd.f32 %v377, %v413
          %v418 = vadd.f32 %v378, %v414
          %v419 = vadd.f32 %v379, %v415
          %v420 = vld [vmem:[%s1] sm:$0xff]
          %v421 = vld [vmem:[%s1 + $0x8] sm:$0xff]
          %v422 = vld [vmem:[%s1 + $0x10] sm:$0xff]
          %v423 = vld [vmem:[%s1 + $0x18] sm:$0xff]
          %v424 = vld [vmem:[%s1 + $0x20] sm:$0xff]
          %v425 = vld [vmem:[%s1 + $0x28] sm:$0xff]
          %v426 = vld [vmem:[%s1 + $0x30] sm:$0xff]
          %v427 = vld [vmem:[%s1 + $0x38] sm:$0xff]
          %v428 = vld [vmem:[%s1 + $0x40] sm:$0xff]
          %v429 = vld [vmem:[%s1 + $0x48] sm:$0xff]
          %v430 = vld [vmem:[%s1 + $0x50] sm:$0xff]
          %v431 = vld [vmem:[%s1 + $0x58] sm:$0xff]
          %v432 = vld [vmem:[%s1 + $0x60] sm:$0xff]
          %v433 = vld [vmem:[%s1 + $0x68] sm:$0xff]
          %v434 = vld [vmem:[%s1 + $0x70] sm:$0xff]
          %v435 = vld [vmem:[%s1 + $0x78] sm:$0xff]
          %v436 = vld [vmem:[%s1 + $0x80] sm:$0xff]
          %v437 = vld [vmem:[%s1 + $0x88] sm:$0xff]
          %v438 = vld [vmem:[%s1 + $0x90] sm:$0xff]
          %v439 = vld [vmem:[%s1 + $0x98] sm:$0xff]
          %v440 = vld [vmem:[%s1 + $0xa0] sm:$0xff]
          %v441 = vld [vmem:[%s1 + $0xa8] sm:$0x1f]
          %v442 = vld [vmem:[%s1 + $0xb0] sm:$0x1f]
          %v443 = vld [vmem:[%s1 + $0xb8] sm:$0x1f]
          %v444 = vld [vmem:[%s1 + $0xc0] sm:$0x1f]
          %v445 = vld [vmem:[%s1 + $0xc8] sm:$0x1f]
          %v446 = vld [vmem:[%s1 + $0xd0] sm:$0x1f]
          %v447 = vld [vmem:[%s1 + $0xd8] sm:$0x1f]
          %v449 = vsel %vm281, %v416, 0
          %v452 = vsel %vm281, %v417, 0
          %v455 = vsel %vm281, %v418, 0
          %v458 = vsel %vm281, %v419, 0
          %vm460 = vcmask 1044480
          %v462 = vsel %vm460, %v441, 0
          %v465 = vsel %vm460, %v442, 0
          %v468 = vsel %vm460, %v443, 0
          %v471 = vsel %vm460, %v444, 0
          %v474 = vsel %vm460, %v445, 0
          %v477 = vsel %vm460, %v446, 0
          %v480 = vsel %vm460, %v447, 0
          %482 = vmatprep.subr.mxu0 0.0
          %483 = vmatpush1.msra.mxu0 0.0
          %484 = vmatprep.subr.mxu0 0.0
          %485 = vmatpush1.msra.mxu0 0.0
          %486 = vmatprep.subr.mxu0 0.0
          %487 = vmatpush1.msra.mxu0 0.0
          %488 = vmatprep.subr.mxu0 0.0
          %489 = vmatpush1.msra.mxu0 0.0
          %490 = vmatprep.subr.mxu0 0.0
          %491 = vmatpush1.msra.mxu0 0.0
          %492 = vmatprep.subr.mxu0 0.0
          %493 = vmatpush1.msra.mxu0 0.0
          %494 = vmatprep.subr.mxu0 0.0
          %495 = vmatpush1.msra.mxu0 0.0
          %496 = vmatprep.subr.mxu0 0.0
          %497 = vmatpush1.msra.mxu0 0.0
          %498 = vmatprep.subr.mxu0 0.0
          %499 = vmatpush1.msra.mxu0 0.0
          %500 = vmatprep.subr.mxu0 0.0
          %501 = vmatpush1.msra.mxu0 0.0
          %502 = vmatprep.subr.mxu0 0.0
          %503 = vmatpush1.msra.mxu0 0.0
          %504 = vmatprep.subr.mxu0 0.0
          %505 = vmatpush1.msra.mxu0 0.0
          %506 = vmatprep.subr.mxu0 %v465
          %507 = vmatpush1.msra.mxu0 %v462
          %508 = vmatprep.subr.mxu0 %v435
          %509 = vmatpush1.msra.mxu0 %v434
          %510 = vmatprep.subr.mxu0 %v428
          %511 = vmatpush1.msra.mxu0 %v427
          %512 = vmatprep.subr.mxu0 %v421
          %513 = vmatpush1.msra.mxu0 %v420
          %514 = vmatprep.subr.mxu0 0.0
          %515 = vmatpush2.msra.mxu0 0.0
          %516 = vmatprep.subr.mxu0 0.0
          %517 = vmatpush2.msra.mxu0 0.0
          %518 = vmatprep.subr.mxu0 0.0
          %519 = vmatpush2.msra.mxu0 0.0
          %520 = vmatprep.subr.mxu0 0.0
          %521 = vmatpush2.msra.mxu0 0.0
          %522 = vmatprep.subr.mxu0 0.0
          %523 = vmatpush2.msra.mxu0 0.0
          %524 = vmatprep.subr.mxu0 0.0
          %525 = vmatpush2.msra.mxu0 0.0
          %526 = vmatprep.subr.mxu0 0.0
          %527 = vmatpush2.msra.mxu0 0.0
          %528 = vmatprep.subr.mxu0 0.0
          %529 = vmatpush2.msra.mxu0 0.0
          %530 = vmatprep.subr.mxu0 0.0
          %531 = vmatpush2.msra.mxu0 0.0
          %532 = vmatprep.subr.mxu0 0.0
          %533 = vmatpush2.msra.mxu0 0.0
          %534 = vmatprep.subr.mxu0 0.0
          %535 = vmatpush2.msra.mxu0 0.0
          %536 = vmatprep.subr.mxu0 0.0
          %537 = vmatpush2.msra.mxu0 0.0
          %538 = vmatprep.subr.mxu0 0.0
          %539 = vmatpush2.msra.mxu0 0.0
          %540 = vmatprep.subr.mxu0 0.0
          %541 = vmatpush2.msra.mxu0 0.0
          %542 = vmatprep.subr.mxu0 0.0
          %543 = vmatpush2.msra.mxu0 0.0
          %544 = vmatprep.subr.mxu0 0.0
          %545 = vmatpush2.msra.mxu0 0.0
          %546 = vmatprep.mubr.f32.mxu0 0.0
          %547 = vmatmul.mubr.f32.gmra.mxu0 %v449
          %v548 = vpop.f32.mrf.mxu0
          %v549 = vadd.f32 0.0, %v548
          %v550 = vpop.f32.mrf.mxu0
          %v551 = vadd.f32 0.0, %v550
          %552 = vmatprep.mubr.f32.mxu0 0.0
          %553 = vmatmul.mubr.f32.gmra.mxu0 %v452
          %v554 = vpop.f32.mrf.mxu0
          %v555 = vadd.f32 0.0, %v554
          %v556 = vpop.f32.mrf.mxu0
          %v557 = vadd.f32 0.0, %v556
          %558 = vmatprep.mubr.f32.mxu0 0.0
          %559 = vmatmul.mubr.f32.gmra.mxu0 %v455
          %v560 = vpop.f32.mrf.mxu0
          %v561 = vadd.f32 0.0, %v560
          %v562 = vpop.f32.mrf.mxu0
          %v563 = vadd.f32 0.0, %v562
          %564 = vmatprep.mubr.f32.mxu0 0.0
          %565 = vmatmul.mubr.f32.gmra.mxu0 %v458
          %v566 = vpop.f32.mrf.mxu0
          %v567 = vadd.f32 0.0, %v566
          %v568 = vpop.f32.mrf.mxu0
          %v569 = vadd.f32 0.0, %v568
          %570 = vdwg.mxu0
          %571 = vmatprep.subr.mxu0 0.0
          %572 = vmatpush1.msra.mxu0 0.0
          %573 = vmatprep.subr.mxu0 0.0
          %574 = vmatpush1.msra.mxu0 0.0
          %575 = vmatprep.subr.mxu0 0.0
          %576 = vmatpush1.msra.mxu0 0.0
          %577 = vmatprep.subr.mxu0 0.0
          %578 = vmatpush1.msra.mxu0 0.0
          %579 = vmatprep.subr.mxu0 0.0
          %580 = vmatpush1.msra.mxu0 0.0
          %581 = vmatprep.subr.mxu0 0.0
          %582 = vmatpush1.msra.mxu0 0.0
          %583 = vmatprep.subr.mxu0 0.0
          %584 = vmatpush1.msra.mxu0 0.0
          %585 = vmatprep.subr.mxu0 0.0
          %586 = vmatpush1.msra.mxu0 0.0
          %587 = vmatprep.subr.mxu0 0.0
          %588 = vmatpush1.msra.mxu0 0.0
          %589 = vmatprep.subr.mxu0 0.0
          %590 = vmatpush1.msra.mxu0 0.0
          %591 = vmatprep.subr.mxu0 0.0
          %592 = vmatpush1.msra.mxu0 0.0
          %593 = vmatprep.subr.mxu0 0.0
          %594 = vmatpush1.msra.mxu0 0.0
          %595 = vmatprep.subr.mxu0 %v471
          %596 = vmatpush1.msra.mxu0 %v468
          %597 = vmatprep.subr.mxu0 %v437
          %598 = vmatpush1.msra.mxu0 %v436
          %599 = vmatprep.subr.mxu0 %v430
          %600 = vmatpush1.msra.mxu0 %v429
          %601 = vmatprep.subr.mxu0 %v423
          %602 = vmatpush1.msra.mxu0 %v422
          %603 = vmatprep.subr.mxu0 0.0
          %604 = vmatpush2.msra.mxu0 0.0
          %605 = vmatprep.subr.mxu0 0.0
          %606 = vmatpush2.msra.mxu0 0.0
          %607 = vmatprep.subr.mxu0 0.0
          %608 = vmatpush2.msra.mxu0 0.0
          %609 = vmatprep.subr.mxu0 0.0
          %610 = vmatpush2.msra.mxu0 0.0
          %611 = vmatprep.subr.mxu0 0.0
          %612 = vmatpush2.msra.mxu0 0.0
          %613 = vmatprep.subr.mxu0 0.0
          %614 = vmatpush2.msra.mxu0 0.0
          %615 = vmatprep.subr.mxu0 0.0
          %616 = vmatpush2.msra.mxu0 0.0
          %617 = vmatprep.subr.mxu0 0.0
          %618 = vmatpush2.msra.mxu0 0.0
          %619 = vmatprep.subr.mxu0 0.0
          %620 = vmatpush2.msra.mxu0 0.0
          %621 = vmatprep.subr.mxu0 0.0
          %622 = vmatpush2.msra.mxu0 0.0
          %623 = vmatprep.subr.mxu0 0.0
          %624 = vmatpush2.msra.mxu0 0.0
          %625 = vmatprep.subr.mxu0 0.0
          %626 = vmatpush2.msra.mxu0 0.0
          %627 = vmatprep.subr.mxu0 0.0
          %628 = vmatpush2.msra.mxu0 0.0
          %629 = vmatprep.subr.mxu0 0.0
          %630 = vmatpush2.msra.mxu0 0.0
          %631 = vmatprep.subr.mxu0 0.0
          %632 = vmatpush2.msra.mxu0 0.0
          %633 = vmatprep.subr.mxu0 0.0
          %634 = vmatpush2.msra.mxu0 0.0
          %635 = vmatprep.mubr.f32.mxu0 0.0
          %636 = vmatmul.mubr.f32.gmra.mxu0 %v449
          %v637 = vpop.f32.mrf.mxu0
          %v638 = vadd.f32 0.0, %v637
          %v639 = vpop.f32.mrf.mxu0
          %v640 = vadd.f32 0.0, %v639
          %641 = vmatprep.mubr.f32.mxu0 0.0
          %642 = vmatmul.mubr.f32.gmra.mxu0 %v452
          %v643 = vpop.f32.mrf.mxu0
          %v644 = vadd.f32 0.0, %v643
          %v645 = vpop.f32.mrf.mxu0
          %v646 = vadd.f32 0.0, %v645
          %647 = vmatprep.mubr.f32.mxu0 0.0
          %648 = vmatmul.mubr.f32.gmra.mxu0 %v455
          %v649 = vpop.f32.mrf.mxu0
          %v650 = vadd.f32 0.0, %v649
          %v651 = vpop.f32.mrf.mxu0
          %v652 = vadd.f32 0.0, %v651
          %653 = vmatprep.mubr.f32.mxu0 0.0
          %654 = vmatmul.mubr.f32.gmra.mxu0 %v458
          %v655 = vpop.f32.mrf.mxu0
          %v656 = vadd.f32 0.0, %v655
          %v657 = vpop.f32.mrf.mxu0
          %v658 = vadd.f32 0.0, %v657
          %659 = vdwg.mxu0
          %660 = vmatprep.subr.mxu0 0.0
          %661 = vmatpush1.msra.mxu0 0.0
          %662 = vmatprep.subr.mxu0 0.0
          %663 = vmatpush1.msra.mxu0 0.0
          %664 = vmatprep.subr.mxu0 0.0
          %665 = vmatpush1.msra.mxu0 0.0
          %666 = vmatprep.subr.mxu0 0.0
          %667 = vmatpush1.msra.mxu0 0.0
          %668 = vmatprep.subr.mxu0 0.0
          %669 = vmatpush1.msra.mxu0 0.0
          %670 = vmatprep.subr.mxu0 0.0
          %671 = vmatpush1.msra.mxu0 0.0
          %672 = vmatprep.subr.mxu0 0.0
          %673 = vmatpush1.msra.mxu0 0.0
          %674 = vmatprep.subr.mxu0 0.0
          %675 = vmatpush1.msra.mxu0 0.0
          %676 = vmatprep.subr.mxu0 0.0
          %677 = vmatpush1.msra.mxu0 0.0
          %678 = vmatprep.subr.mxu0 0.0
          %679 = vmatpush1.msra.mxu0 0.0
          %680 = vmatprep.subr.mxu0 0.0
          %681 = vmatpush1.msra.mxu0 0.0
          %682 = vmatprep.subr.mxu0 0.0
          %683 = vmatpush1.msra.mxu0 0.0
          %684 = vmatprep.subr.mxu0 %v477
          %685 = vmatpush1.msra.mxu0 %v474
          %686 = vmatprep.subr.mxu0 %v439
          %687 = vmatpush1.msra.mxu0 %v438
          %688 = vmatprep.subr.mxu0 %v432
          %689 = vmatpush1.msra.mxu0 %v431
          %690 = vmatprep.subr.mxu0 %v425
          %691 = vmatpush1.msra.mxu0 %v424
          %692 = vmatprep.subr.mxu0 0.0
          %693 = vmatpush2.msra.mxu0 0.0
          %694 = vmatprep.subr.mxu0 0.0
          %695 = vmatpush2.msra.mxu0 0.0
          %696 = vmatprep.subr.mxu0 0.0
          %697 = vmatpush2.msra.mxu0 0.0
          %698 = vmatprep.subr.mxu0 0.0
          %699 = vmatpush2.msra.mxu0 0.0
          %700 = vmatprep.subr.mxu0 0.0
          %701 = vmatpush2.msra.mxu0 0.0
          %702 = vmatprep.subr.mxu0 0.0
          %703 = vmatpush2.msra.mxu0 0.0
          %704 = vmatprep.subr.mxu0 0.0
          %705 = vmatpush2.msra.mxu0 0.0
          %706 = vmatprep.subr.mxu0 0.0
          %707 = vmatpush2.msra.mxu0 0.0
          %708 = vmatprep.subr.mxu0 0.0
          %709 = vmatpush2.msra.mxu0 0.0
          %710 = vmatprep.subr.mxu0 0.0
          %711 = vmatpush2.msra.mxu0 0.0
          %712 = vmatprep.subr.mxu0 0.0
          %713 = vmatpush2.msra.mxu0 0.0
          %714 = vmatprep.subr.mxu0 0.0
          %715 = vmatpush2.msra.mxu0 0.0
          %716 = vmatprep.subr.mxu0 0.0
          %717 = vmatpush2.msra.mxu0 0.0
          %718 = vmatprep.subr.mxu0 0.0
          %719 = vmatpush2.msra.mxu0 0.0
          %720 = vmatprep.subr.mxu0 0.0
          %721 = vmatpush2.msra.mxu0 0.0
          %722 = vmatprep.subr.mxu0 0.0
          %723 = vmatpush2.msra.mxu0 0.0
          %724 = vmatprep.mubr.f32.mxu0 0.0
          %725 = vmatmul.mubr.f32.gmra.mxu0 %v449
          %v726 = vpop.f32.mrf.mxu0
          %v727 = vadd.f32 0.0, %v726
          %v728 = vpop.f32.mrf.mxu0
          %v729 = vadd.f32 0.0, %v728
          %730 = vmatprep.mubr.f32.mxu0 0.0
          %731 = vmatmul.mubr.f32.gmra.mxu0 %v452
          %v732 = vpop.f32.mrf.mxu0
          %v733 = vadd.f32 0.0, %v732
          %v734 = vpop.f32.mrf.mxu0
          %v735 = vadd.f32 0.0, %v734
          %736 = vmatprep.mubr.f32.mxu0 0.0
          %737 = vmatmul.mubr.f32.gmra.mxu0 %v455
          %v738 = vpop.f32.mrf.mxu0
          %v739 = vadd.f32 0.0, %v738
          %v740 = vpop.f32.mrf.mxu0
          %v741 = vadd.f32 0.0, %v740
          %742 = vmatprep.mubr.f32.mxu0 0.0
          %743 = vmatmul.mubr.f32.gmra.mxu0 %v458
          %v744 = vpop.f32.mrf.mxu0
          %v745 = vadd.f32 0.0, %v744
          %v746 = vpop.f32.mrf.mxu0
          %v747 = vadd.f32 0.0, %v746
          %748 = vdwg.mxu0
          %749 = vmatprep.subr.mxu0 0.0
          %750 = vmatpush1.msra.mxu0 0.0
          %751 = vmatprep.subr.mxu0 0.0
          %752 = vmatpush1.msra.mxu0 0.0
          %753 = vmatprep.subr.mxu0 0.0
          %754 = vmatpush1.msra.mxu0 0.0
          %755 = vmatprep.subr.mxu0 0.0
          %756 = vmatpush1.msra.mxu0 0.0
          %757 = vmatprep.subr.mxu0 0.0
          %758 = vmatpush1.msra.mxu0 0.0
          %759 = vmatprep.subr.mxu0 0.0
          %760 = vmatpush1.msra.mxu0 0.0
          %761 = vmatprep.subr.mxu0 0.0
          %762 = vmatpush1.msra.mxu0 0.0
          %763 = vmatprep.subr.mxu0 0.0
          %764 = vmatpush1.msra.mxu0 0.0
          %765 = vmatprep.subr.mxu0 0.0
          %766 = vmatpush1.msra.mxu0 0.0
          %767 = vmatprep.subr.mxu0 0.0
          %768 = vmatpush1.msra.mxu0 0.0
          %769 = vmatprep.subr.mxu0 0.0
          %770 = vmatpush1.msra.mxu0 0.0
          %771 = vmatprep.subr.mxu0 0.0
          %772 = vmatpush1.msra.mxu0 0.0
          %773 = vmatprep.subr.mxu0 0.0
          %774 = vmatpush1.msra.mxu0 %v480
          %775 = vmatprep.subr.mxu0 0.0
          %776 = vmatpush1.msra.mxu0 %v440
          %777 = vmatprep.subr.mxu0 0.0
          %778 = vmatpush1.msra.mxu0 %v433
          %779 = vmatprep.subr.mxu0 0.0
          %780 = vmatpush1.msra.mxu0 %v426
          %781 = vmatprep.subr.mxu0 0.0
          %782 = vmatpush2.msra.mxu0 0.0
          %783 = vmatprep.subr.mxu0 0.0
          %784 = vmatpush2.msra.mxu0 0.0
          %785 = vmatprep.subr.mxu0 0.0
          %786 = vmatpush2.msra.mxu0 0.0
          %787 = vmatprep.subr.mxu0 0.0
          %788 = vmatpush2.msra.mxu0 0.0
          %789 = vmatprep.subr.mxu0 0.0
          %790 = vmatpush2.msra.mxu0 0.0
          %791 = vmatprep.subr.mxu0 0.0
          %792 = vmatpush2.msra.mxu0 0.0
          %793 = vmatprep.subr.mxu0 0.0
          %794 = vmatpush2.msra.mxu0 0.0
          %795 = vmatprep.subr.mxu0 0.0
          %796 = vmatpush2.msra.mxu0 0.0
          %797 = vmatprep.subr.mxu0 0.0
          %798 = vmatpush2.msra.mxu0 0.0
          %799 = vmatprep.subr.mxu0 0.0
          %800 = vmatpush2.msra.mxu0 0.0
          %801 = vmatprep.subr.mxu0 0.0
          %802 = vmatpush2.msra.mxu0 0.0
          %803 = vmatprep.subr.mxu0 0.0
          %804 = vmatpush2.msra.mxu0 0.0
          %805 = vmatprep.subr.mxu0 0.0
          %806 = vmatpush2.msra.mxu0 0.0
          %807 = vmatprep.subr.mxu0 0.0
          %808 = vmatpush2.msra.mxu0 0.0
          %809 = vmatprep.subr.mxu0 0.0
          %810 = vmatpush2.msra.mxu0 0.0
          %811 = vmatprep.subr.mxu0 0.0
          %812 = vmatpush2.msra.mxu0 0.0
          %813 = vmatprep.mubr.f32.mxu0 0.0
          %814 = vmatmul.mubr.f32.gmra.mxu0 %v449
          %v815 = vpop.f32.mrf.mxu0
          %v816 = vadd.f32 0.0, %v815
          %v817 = vpop.f32.mrf.mxu0
          %818 = vmatprep.mubr.f32.mxu0 0.0
          %819 = vmatmul.mubr.f32.gmra.mxu0 %v452
          %v820 = vpop.f32.mrf.mxu0
          %v821 = vadd.f32 0.0, %v820
          %v822 = vpop.f32.mrf.mxu0
          %823 = vmatprep.mubr.f32.mxu0 0.0
          %824 = vmatmul.mubr.f32.gmra.mxu0 %v455
          %v825 = vpop.f32.mrf.mxu0
          %v826 = vadd.f32 0.0, %v825
          %v827 = vpop.f32.mrf.mxu0
          %828 = vmatprep.mubr.f32.mxu0 0.0
          %829 = vmatmul.mubr.f32.gmra.mxu0 %v458
          %v830 = vpop.f32.mrf.mxu0
          %v831 = vadd.f32 0.0, %v830
          %v832 = vpop.f32.mrf.mxu0
          %833 = vdwg.mxu0
          %v834 = vld [vmem:[%s2] sm:$0xff]
          %v835 = vld [vmem:[%s2 + $0x8] sm:$0xff]
          %v836 = vld [vmem:[%s2 + $0x10] sm:$0xff]
          %v837 = vld [vmem:[%s2 + $0x18] sm:$0xff]
          %v838 = vld [vmem:[%s2 + $0x20] sm:$0xff]
          %v839 = vld [vmem:[%s2 + $0x28] sm:$0xff]
          %v840 = vld [vmem:[%s2 + $0x30] sm:$0xff]
          %v841 = vld [vmem:[%s2 + $0x38] sm:$0xff]
          %v842 = vld [vmem:[%s2 + $0x40] sm:$0xff]
          %v843 = vld [vmem:[%s2 + $0x48] sm:$0xff]
          %v844 = vld [vmem:[%s2 + $0x50] sm:$0xff]
          %v845 = vld [vmem:[%s2 + $0x58] sm:$0xff]
          %v846 = vld [vmem:[%s2 + $0x60] sm:$0xff]
          %v847 = vld [vmem:[%s2 + $0x68] sm:$0xff]
          %v848 = vld [vmem:[%s2 + $0x70] sm:$0xff]
          %v849 = vld [vmem:[%s2 + $0x78] sm:$0xff]
          %v850 = vld [vmem:[%s2 + $0x80] sm:$0xff]
          %v851 = vld [vmem:[%s2 + $0x88] sm:$0xff]
          %v852 = vld [vmem:[%s2 + $0x90] sm:$0xff]
          %v853 = vld [vmem:[%s2 + $0x98] sm:$0xff]
          %v854 = vld [vmem:[%s2 + $0xa0] sm:$0xff]
          %v855 = vld [vmem:[%s2 + $0xa8] sm:$0x1f]
          %v856 = vld [vmem:[%s2 + $0xb0] sm:$0x1f]
          %v857 = vld [vmem:[%s2 + $0xb8] sm:$0x1f]
          %v858 = vld [vmem:[%s2 + $0xc0] sm:$0x1f]
          %v859 = vld [vmem:[%s2 + $0xc8] sm:$0x1f]
          %v860 = vld [vmem:[%s2 + $0xd0] sm:$0x1f]
          %v861 = vld [vmem:[%s2 + $0xd8] sm:$0x1f]
          %v862 = vmul.f32 %v834, %v362
          %v863 = vmul.f32 %v835, %v362
          %v864 = vmul.f32 %v836, %v362
          %v865 = vmul.f32 %v837, %v362
          %v866 = vmul.f32 %v838, %v362
          %v867 = vmul.f32 %v839, %v362
          %v868 = vmul.f32 %v840, %v362
          %v869 = vmul.f32 %v841, %v365
          %v870 = vmul.f32 %v842, %v365
          %v871 = vmul.f32 %v843, %v365
          %v872 = vmul.f32 %v844, %v365
          %v873 = vmul.f32 %v845, %v365
          %v874 = vmul.f32 %v846, %v365
          %v875 = vmul.f32 %v847, %v365
          %v876 = vmul.f32 %v848, %v368
          %v877 = vmul.f32 %v849, %v368
          %v878 = vmul.f32 %v850, %v368
          %v879 = vmul.f32 %v851, %v368
          %v880 = vmul.f32 %v852, %v368
          %v881 = vmul.f32 %v853, %v368
          %v882 = vmul.f32 %v854, %v368
          %v883 = vmul.f32 %v855, %v371
          %v884 = vmul.f32 %v856, %v371
          %v885 = vmul.f32 %v857, %v371
          %v886 = vmul.f32 %v858, %v371
          %v887 = vmul.f32 %v859, %v371
          %v888 = vmul.f32 %v860, %v371
          %v889 = vmul.f32 %v861, %v371
          %v890 = vadd.f32 %v862, %v869
          %v891 = vadd.f32 %v890, %v876
          %v892 = vsel %vm460, %v883, 0.0
          %v893 = vadd.f32 %v891, %v892
          %v894 = vrot.slane %v893, 4
          %v895 = vadd.f32 %v893, %v894
          %v896 = vrot.slane %v895, 2
          %v897 = vadd.f32 %v895, %v896
          %v898 = vrot.slane %v897, 1
          %v899 = vadd.f32 %v897, %v898
          %v900 = vadd.f32 %v863, %v870
          %v901 = vadd.f32 %v900, %v877
          %v902 = vsel %vm460, %v884, 0.0
          %v903 = vadd.f32 %v901, %v902
          %v904 = vrot.slane %v903, 4
          %v905 = vadd.f32 %v903, %v904
          %v906 = vrot.slane %v905, 2
          %v907 = vadd.f32 %v905, %v906
          %v908 = vrot.slane %v907, 1
          %v909 = vadd.f32 %v907, %v908
          %v910 = vadd.f32 %v864, %v871
          %v911 = vadd.f32 %v910, %v878
          %v912 = vsel %vm460, %v885, 0.0
          %v913 = vadd.f32 %v911, %v912
          %v914 = vrot.slane %v913, 4
          %v915 = vadd.f32 %v913, %v914
          %v916 = vrot.slane %v915, 2
          %v917 = vadd.f32 %v915, %v916
          %v918 = vrot.slane %v917, 1
          %v919 = vadd.f32 %v917, %v918
          %v920 = vadd.f32 %v865, %v872
          %v921 = vadd.f32 %v920, %v879
          %v922 = vsel %vm460, %v886, 0.0
          %v923 = vadd.f32 %v921, %v922
          %v924 = vrot.slane %v923, 4
          %v925 = vadd.f32 %v923, %v924
          %v926 = vrot.slane %v925, 2
          %v927 = vadd.f32 %v925, %v926
          %v928 = vrot.slane %v927, 1
          %v929 = vadd.f32 %v927, %v928
          %v930 = vadd.f32 %v866, %v873
          %v931 = vadd.f32 %v930, %v880
          %v932 = vsel %vm460, %v887, 0.0
          %v933 = vadd.f32 %v931, %v932
          %v934 = vrot.slane %v933, 4
          %v935 = vadd.f32 %v933, %v934
          %v936 = vrot.slane %v935, 2
          %v937 = vadd.f32 %v935, %v936
          %v938 = vrot.slane %v937, 1
          %v939 = vadd.f32 %v937, %v938
          %v940 = vadd.f32 %v867, %v874
          %v941 = vadd.f32 %v940, %v881
          %v942 = vsel %vm460, %v888, 0.0
          %v943 = vadd.f32 %v941, %v942
          %v944 = vrot.slane %v943, 4
          %v945 = vadd.f32 %v943, %v944
          %v946 = vrot.slane %v945, 2
          %v947 = vadd.f32 %v945, %v946
          %v948 = vrot.slane %v947, 1
          %v949 = vadd.f32 %v947, %v948
          %v950 = vsel %vm293, %v868, 0.0
          %v951 = vsel %vm293, %v875, 0.0
          %v952 = vadd.f32 %v950, %v951
          %v953 = vsel %vm293, %v882, 0.0
          %v954 = vadd.f32 %v952, %v953
          %v955 = vsel %vm315, %v889, 0.0
          %v956 = vadd.f32 %v954, %v955
          %v957 = vrot.slane %v956, 4
          %v958 = vadd.f32 %v956, %v957
          %v959 = vrot.slane %v958, 2
          %v960 = vadd.f32 %v958, %v959
          %v961 = vrot.slane %v960, 1
          %v962 = vadd.f32 %v960, %v961
          %v963 = vld [vmem:[#allocation4] sm:$0xff]
          %v964 = vld [vmem:[#allocation4 + $0x8] sm:$0xff]
          %v965 = vld [vmem:[#allocation4 + $0x10] sm:$0xff]
          %v966 = vld [vmem:[#allocation4 + $0x18] sm:$0xff]
          %v967 = vld [vmem:[#allocation4 + $0x20] sm:$0xff]
          %v968 = vld [vmem:[#allocation4 + $0x28] sm:$0xff]
          %v969 = vld [vmem:[#allocation4 + $0x30] sm:$0xff]
          %v970 = vld [vmem:[#allocation4 + $0x38] sm:$0xff]
          %v971 = vld [vmem:[#allocation4 + $0x40] sm:$0xff]
          %v972 = vld [vmem:[#allocation4 + $0x48] sm:$0xff]
          %v973 = vld [vmem:[#allocation4 + $0x50] sm:$0xff]
          %v974 = vld [vmem:[#allocation4 + $0x58] sm:$0xff]
          %v975 = vld [vmem:[#allocation4 + $0x60] sm:$0xff]
          %v976 = vld [vmem:[#allocation4 + $0x68] sm:$0xff]
          %v977 = vld [vmem:[#allocation4 + $0x70] sm:$0xff]
          %v978 = vld [vmem:[#allocation4 + $0x78] sm:$0xff]
          %v979 = vld [vmem:[#allocation4 + $0x80] sm:$0xff]
          %v980 = vld [vmem:[#allocation4 + $0x88] sm:$0xff]
          %v981 = vld [vmem:[#allocation4 + $0x90] sm:$0xff]
          %v982 = vld [vmem:[#allocation4 + $0x98] sm:$0xff]
          %v983 = vld [vmem:[#allocation4 + $0xa0] sm:$0xff]
          %v984 = vld [vmem:[#allocation4 + $0xa8] sm:$0x1f]
          %v985 = vld [vmem:[#allocation4 + $0xb0] sm:$0x1f]
          %v986 = vld [vmem:[#allocation4 + $0xb8] sm:$0x1f]
          %v987 = vld [vmem:[#allocation4 + $0xc0] sm:$0x1f]
          %v988 = vld [vmem:[#allocation4 + $0xc8] sm:$0x1f]
          %v989 = vld [vmem:[#allocation4 + $0xd0] sm:$0x1f]
          %v990 = vld [vmem:[#allocation4 + $0xd8] sm:$0x1f]
          %v991 = vmul.f32 %v549, %v899
          %v992 = vmul.f32 %v551, %v909
          %v993 = vmul.f32 %v638, %v919
          %v994 = vmul.f32 %v640, %v929
          %v995 = vmul.f32 %v727, %v939
          %v996 = vmul.f32 %v729, %v949
          %v997 = vmul.f32 %v816, %v962
          %v998 = vmul.f32 %v555, %v899
          %v999 = vmul.f32 %v557, %v909
          %v1000 = vmul.f32 %v644, %v919
          %v1001 = vmul.f32 %v646, %v929
          %v1002 = vmul.f32 %v733, %v939
          %v1003 = vmul.f32 %v735, %v949
          %v1004 = vmul.f32 %v821, %v962
          %v1005 = vmul.f32 %v561, %v899
          %v1006 = vmul.f32 %v563, %v909
          %v1007 = vmul.f32 %v650, %v919
          %v1008 = vmul.f32 %v652, %v929
          %v1009 = vmul.f32 %v739, %v939
          %v1010 = vmul.f32 %v741, %v949
          %v1011 = vmul.f32 %v826, %v962
          %v1012 = vmul.f32 %v567, %v899
          %v1013 = vmul.f32 %v569, %v909
          %v1014 = vmul.f32 %v656, %v919
          %v1015 = vmul.f32 %v658, %v929
          %v1016 = vmul.f32 %v745, %v939
          %v1017 = vmul.f32 %v747, %v949
          %v1018 = vmul.f32 %v831, %v962
          %v1019 = vadd.f32 %v963, %v991
          %v1020 = vadd.f32 %v964, %v992
          %v1021 = vadd.f32 %v965, %v993
          %v1022 = vadd.f32 %v966, %v994
          %v1023 = vadd.f32 %v967, %v995
          %v1024 = vadd.f32 %v968, %v996
          %v1025 = vadd.f32 %v969, %v997
          %v1026 = vadd.f32 %v970, %v998
          %v1027 = vadd.f32 %v971, %v999
          %v1028 = vadd.f32 %v972, %v1000
          %v1029 = vadd.f32 %v973, %v1001
          %v1030 = vadd.f32 %v974, %v1002
          %v1031 = vadd.f32 %v975, %v1003
          %v1032 = vadd.f32 %v976, %v1004
          %v1033 = vadd.f32 %v977, %v1005
          %v1034 = vadd.f32 %v978, %v1006
          %v1035 = vadd.f32 %v979, %v1007
          %v1036 = vadd.f32 %v980, %v1008
          %v1037 = vadd.f32 %v981, %v1009
          %v1038 = vadd.f32 %v982, %v1010
          %v1039 = vadd.f32 %v983, %v1011
          %v1040 = vadd.f32 %v984, %v1012
          %v1041 = vadd.f32 %v985, %v1013
          %v1042 = vadd.f32 %v986, %v1014
          %v1043 = vadd.f32 %v987, %v1015
          %v1044 = vadd.f32 %v988, %v1016
          %v1045 = vadd.f32 %v989, %v1017
          %v1046 = vadd.f32 %v990, %v1018
          %1047 = vst [vmem:[#allocation4] sm:$0xff] %v1019
          %1048 = vst [vmem:[#allocation4 + $0x8] sm:$0xff] %v1020
          %1049 = vst [vmem:[#allocation4 + $0x10] sm:$0xff] %v1021
          %1050 = vst [vmem:[#allocation4 + $0x18] sm:$0xff] %v1022
          %1051 = vst [vmem:[#allocation4 + $0x20] sm:$0xff] %v1023
          %1052 = vst [vmem:[#allocation4 + $0x28] sm:$0xff] %v1024
          %1053 = vst.msk [vmem:[#allocation4 + $0x30] sm:$0xff] %vm293, %v1025
          %1054 = vst [vmem:[#allocation4 + $0x38] sm:$0xff] %v1026
          %1055 = vst [vmem:[#allocation4 + $0x40] sm:$0xff] %v1027
          %1056 = vst [vmem:[#allocation4 + $0x48] sm:$0xff] %v1028
          %1057 = vst [vmem:[#allocation4 + $0x50] sm:$0xff] %v1029
          %1058 = vst [vmem:[#allocation4 + $0x58] sm:$0xff] %v1030
          %1059 = vst [vmem:[#allocation4 + $0x60] sm:$0xff] %v1031
          %1060 = vst.msk [vmem:[#allocation4 + $0x68] sm:$0xff] %vm293, %v1032
          %1061 = vst [vmem:[#allocation4 + $0x70] sm:$0xff] %v1033
          %1062 = vst [vmem:[#allocation4 + $0x78] sm:$0xff] %v1034
          %1063 = vst [vmem:[#allocation4 + $0x80] sm:$0xff] %v1035
          %1064 = vst [vmem:[#allocation4 + $0x88] sm:$0xff] %v1036
          %1065 = vst [vmem:[#allocation4 + $0x90] sm:$0xff] %v1037
          %1066 = vst [vmem:[#allocation4 + $0x98] sm:$0xff] %v1038
          %1067 = vst.msk [vmem:[#allocation4 + $0xa0] sm:$0xff] %vm293, %v1039
          %1068 = vst [vmem:[#allocation4 + $0xa8] sm:$0x1f] %v1040
          %1069 = vst [vmem:[#allocation4 + $0xb0] sm:$0x1f] %v1041
          %1070 = vst [vmem:[#allocation4 + $0xb8] sm:$0x1f] %v1042
          %1071 = vst [vmem:[#allocation4 + $0xc0] sm:$0x1f] %v1043
          %1072 = vst [vmem:[#allocation4 + $0xc8] sm:$0x1f] %v1044
          %1073 = vst [vmem:[#allocation4 + $0xd0] sm:$0x1f] %v1045
          %1074 = vst.msk [vmem:[#allocation4 + $0xd8] sm:$0x1f] %vm315, %v1046
          %v1075 = vmul.f32 %v362, 0.5
          %v1076 = vmul.f32 %v365, 0.5
          %v1077 = vmul.f32 %v368, 0.5
          %v1078 = vmul.f32 %v371, 0.5
          %v1079 = vadd.f32 %v372, %v1075
          %v1080 = vadd.f32 %v373, %v1076
          %v1081 = vadd.f32 %v374, %v1077
          %v1082 = vadd.f32 %v375, %v1078
          %1084 = vset.pattern.permute.xlu0 0
          %1085 = vperm.xlu0 %1084, %v1079
          %v1086 = vpop.permute.xlu0 %1085
          %1089 = vset.pattern.permute.xlu0 0
          %1090 = vperm.xlu0 %1089, %v1080
          %v1091 = vpop.permute.xlu0 %1090
          %1094 = vset.pattern.permute.xlu0 0
          %1095 = vperm.xlu0 %1094, %v1081
          %v1096 = vpop.permute.xlu0 %1095
          %1099 = vset.pattern.permute.xlu0 0
          %1100 = vperm.xlu0 %1099, %v1082
          %v1101 = vpop.permute.xlu0 %1100
          %v1103 = vmul.f32 %v1086, %v355
          %v1104 = vmul.f32 %v1091, %v355
          %v1105 = vmul.f32 %v1096, %v355
          %v1106 = vmul.f32 %v1101, %v355
          %v1107 = vadd.f32 %v376, %v1103
          %v1108 = vadd.f32 %v377, %v1104
          %v1109 = vadd.f32 %v378, %v1105
          %v1110 = vadd.f32 %v379, %v1106
          %1111 = vst.msk [vmem:[#allocation3] sm:$0xff] %vm281, %v1107
          %1112 = vst.msk [vmem:[#allocation3 + $0x8] sm:$0xff] %vm281, %v1108
          %1113 = vst.msk [vmem:[#allocation3 + $0x10] sm:$0xff] %vm281, %v1109
          %1114 = vst.msk [vmem:[#allocation3 + $0x18] sm:$0x1f] %vm285, %v1110
          %v1115 = vadd.f32 %v372, %v362
          %v1116 = vadd.f32 %v373, %v365
          %v1117 = vadd.f32 %v374, %v368
          %v1118 = vadd.f32 %v375, %v371
          %1119 = vst.msk [vmem:[#allocation2] sm:$0xff] %vm275, %v1115
          %1120 = vst.msk [vmem:[#allocation2 + $0x8] sm:$0xff] %vm275, %v1116
          %1121 = vst.msk [vmem:[#allocation2 + $0x10] sm:$0xff] %vm275, %v1117
          %1122 = vst.msk [vmem:[#allocation2 + $0x18] sm:$0x1f] %vm279, %v1118
          %v1123 = vld [vmem:[%s3] sm:$0xff]
          %v1124 = vld [vmem:[%s3 + $0x8] sm:$0xff]
          %v1125 = vld [vmem:[%s3 + $0x10] sm:$0xff]
          %v1126 = vld [vmem:[%s3 + $0x18] sm:$0x1f]
          %v1127 = vld [vmem:[#allocation2] sm:$0xff]
          %v1128 = vld [vmem:[#allocation2 + $0x8] sm:$0xff]
          %v1129 = vld [vmem:[#allocation2 + $0x10] sm:$0xff]
          %v1130 = vld [vmem:[#allocation2 + $0x18] sm:$0x1f]
          %v1131 = vmul.f32 %v1127, 0.01
          %v1132 = vmul.f32 %v1128, 0.01
          %v1133 = vmul.f32 %v1129, 0.01
          %v1134 = vmul.f32 %v1130, 0.01
          %v1135 = vmax.f32 %v1127, %v1131
          %v1136 = vmax.f32 %v1128, %v1132
          %v1137 = vmax.f32 %v1129, %v1133
          %v1138 = vmax.f32 %v1130, %v1134
          %v1139 = vmul.f32 %v1123, %v1135
          %v1140 = vmul.f32 %v1124, %v1136
          %v1141 = vmul.f32 %v1125, %v1137
          %v1142 = vmul.f32 %v1126, %v1138
          %v1143 = vsel %vm275, %v1139, 0.0
          %v1144 = vsel %vm275, %v1140, 0.0
          %v1145 = vadd.f32 %v1143, %v1144
          %v1146 = vsel %vm275, %v1141, 0.0
          %v1147 = vadd.f32 %v1145, %v1146
          %v1148 = vsel %vm279, %v1142, 0.0
          %v1149 = vadd.f32 %v1147, %v1148
          %v1150 = vrot.slane %v1149, 4
          %v1151 = vadd.f32 %v1149, %v1150
          %v1152 = vrot.slane %v1151, 2
          %v1153 = vadd.f32 %v1151, %v1152
          %v1154 = vrot.slane %v1153, 1
          %v1155 = vadd.f32 %v1153, %v1154
          %v1156 = vld [vmem:[%s4] sm:$0xff]
          %v1157 = vld [vmem:[%s4 + $0x8] sm:$0xff]
          %v1158 = vld [vmem:[%s4 + $0x10] sm:$0xff]
          %v1159 = vld [vmem:[%s4 + $0x18] sm:$0x1f]
          %v1160 = vld [vmem:[#allocation3] sm:$0xff]
          %v1161 = vld [vmem:[#allocation3 + $0x8] sm:$0xff]
          %v1162 = vld [vmem:[#allocation3 + $0x10] sm:$0xff]
          %v1163 = vld [vmem:[#allocation3 + $0x18] sm:$0x1f]
          %v1164 = vmul.f32 %v1160, 0.01
          %v1165 = vmul.f32 %v1161, 0.01
          %v1166 = vmul.f32 %v1162, 0.01
          %v1167 = vmul.f32 %v1163, 0.01
          %v1168 = vmax.f32 %v1160, %v1164
          %v1169 = vmax.f32 %v1161, %v1165
          %v1170 = vmax.f32 %v1162, %v1166
          %v1171 = vmax.f32 %v1163, %v1167
          %v1172 = vmul.f32 %v1156, %v1168
          %v1173 = vmul.f32 %v1157, %v1169
          %v1174 = vmul.f32 %v1158, %v1170
          %v1175 = vmul.f32 %v1159, %v1171
          %v1176 = vsel %vm281, %v1172, 0.0
          %1177 = vadd.xlane.f32.xlu0 %v1176
          %v1178 = vpop.xlane.xlu0 %1177
          %v1179 = vsel %vm281, %v1173, 0.0
          %1180 = vadd.xlane.f32.xlu0 %v1179
          %v1181 = vpop.xlane.xlu0 %1180
          %v1182 = vsel %vm281, %v1174, 0.0
          %1183 = vadd.xlane.f32.xlu0 %v1182
          %v1184 = vpop.xlane.xlu0 %1183
          %v1185 = vsel %vm285, %v1175, 0.0
          %1186 = vadd.xlane.f32.xlu0 %v1185
          %v1187 = vpop.xlane.xlu0 %1186
          %v1188 = vadd.f32 %v1178, %v1181
          %v1189 = vadd.f32 %v1188, %v1184
          %v1190 = vsel %vm460, %v1187, 0.0
          %v1191 = vadd.f32 %v1189, %v1190
          %v1192 = vrot.slane %v1191, 4
          %v1193 = vadd.f32 %v1191, %v1192
          %v1194 = vrot.slane %v1193, 2
          %v1195 = vadd.f32 %v1193, %v1194
          %v1196 = vrot.slane %v1195, 1
          %v1197 = vadd.f32 %v1195, %v1196
          %v1198 = vld [vmem:[%s5] sm:$0xff]
          %v1199 = vld [vmem:[%s5 + $0x8] sm:$0xff]
          %v1200 = vld [vmem:[%s5 + $0x10] sm:$0xff]
          %v1201 = vld [vmem:[%s5 + $0x18] sm:$0xff]
          %v1202 = vld [vmem:[%s5 + $0x20] sm:$0xff]
          %v1203 = vld [vmem:[%s5 + $0x28] sm:$0xff]
          %v1204 = vld [vmem:[%s5 + $0x30] sm:$0xff]
          %v1205 = vld [vmem:[%s5 + $0x38] sm:$0xff]
          %v1206 = vld [vmem:[%s5 + $0x40] sm:$0xff]
          %v1207 = vld [vmem:[%s5 + $0x48] sm:$0xff]
          %v1208 = vld [vmem:[%s5 + $0x50] sm:$0xff]
          %v1209 = vld [vmem:[%s5 + $0x58] sm:$0xff]
          %v1210 = vld [vmem:[%s5 + $0x60] sm:$0xff]
          %v1211 = vld [vmem:[%s5 + $0x68] sm:$0xff]
          %v1212 = vld [vmem:[%s5 + $0x70] sm:$0xff]
          %v1213 = vld [vmem:[%s5 + $0x78] sm:$0xff]
          %v1214 = vld [vmem:[%s5 + $0x80] sm:$0xff]
          %v1215 = vld [vmem:[%s5 + $0x88] sm:$0xff]
          %v1216 = vld [vmem:[%s5 + $0x90] sm:$0xff]
          %v1217 = vld [vmem:[%s5 + $0x98] sm:$0xff]
          %v1218 = vld [vmem:[%s5 + $0xa0] sm:$0xff]
          %v1219 = vld [vmem:[%s5 + $0xa8] sm:$0x1f]
          %v1220 = vld [vmem:[%s5 + $0xb0] sm:$0x1f]
          %v1221 = vld [vmem:[%s5 + $0xb8] sm:$0x1f]
          %v1222 = vld [vmem:[%s5 + $0xc0] sm:$0x1f]
          %v1223 = vld [vmem:[%s5 + $0xc8] sm:$0x1f]
          %v1224 = vld [vmem:[%s5 + $0xd0] sm:$0x1f]
          %v1225 = vld [vmem:[%s5 + $0xd8] sm:$0x1f]
          %v1226 = vld [vmem:[#allocation4] sm:$0xff]
          %v1227 = vld [vmem:[#allocation4 + $0x8] sm:$0xff]
          %v1228 = vld [vmem:[#allocation4 + $0x10] sm:$0xff]
          %v1229 = vld [vmem:[#allocation4 + $0x18] sm:$0xff]
          %v1230 = vld [vmem:[#allocation4 + $0x20] sm:$0xff]
          %v1231 = vld [vmem:[#allocation4 + $0x28] sm:$0xff]
          %v1232 = vld [vmem:[#allocation4 + $0x30] sm:$0xff]
          %v1233 = vld [vmem:[#allocation4 + $0x38] sm:$0xff]
          %v1234 = vld [vmem:[#allocation4 + $0x40] sm:$0xff]
          %v1235 = vld [vmem:[#allocation4 + $0x48] sm:$0xff]
          %v1236 = vld [vmem:[#allocation4 + $0x50] sm:$0xff]
          %v1237 = vld [vmem:[#allocation4 + $0x58] sm:$0xff]
          %v1238 = vld [vmem:[#allocation4 + $0x60] sm:$0xff]
          %v1239 = vld [vmem:[#allocation4 + $0x68] sm:$0xff]
          %v1240 = vld [vmem:[#allocation4 + $0x70] sm:$0xff]
          %v1241 = vld [vmem:[#allocation4 + $0x78] sm:$0xff]
          %v1242 = vld [vmem:[#allocation4 + $0x80] sm:$0xff]
          %v1243 = vld [vmem:[#allocation4 + $0x88] sm:$0xff]
          %v1244 = vld [vmem:[#allocation4 + $0x90] sm:$0xff]
          %v1245 = vld [vmem:[#allocation4 + $0x98] sm:$0xff]
          %v1246 = vld [vmem:[#allocation4 + $0xa0] sm:$0xff]
          %v1247 = vld [vmem:[#allocation4 + $0xa8] sm:$0x1f]
          %v1248 = vld [vmem:[#allocation4 + $0xb0] sm:$0x1f]
          %v1249 = vld [vmem:[#allocation4 + $0xb8] sm:$0x1f]
          %v1250 = vld [vmem:[#allocation4 + $0xc0] sm:$0x1f]
          %v1251 = vld [vmem:[#allocation4 + $0xc8] sm:$0x1f]
          %v1252 = vld [vmem:[#allocation4 + $0xd0] sm:$0x1f]
          %v1253 = vld [vmem:[#allocation4 + $0xd8] sm:$0x1f]
          %v1254 = vmul.f32 %v1226, 0.01
          %v1255 = vmul.f32 %v1227, 0.01
          %v1256 = vmul.f32 %v1228, 0.01
          %v1257 = vmul.f32 %v1229, 0.01
          %v1258 = vmul.f32 %v1230, 0.01
          %v1259 = vmul.f32 %v1231, 0.01
          %v1260 = vmul.f32 %v1232, 0.01
          %v1261 = vmul.f32 %v1233, 0.01
          %v1262 = vmul.f32 %v1234, 0.01
          %v1263 = vmul.f32 %v1235, 0.01
          %v1264 = vmul.f32 %v1236, 0.01
          %v1265 = vmul.f32 %v1237, 0.01
          %v1266 = vmul.f32 %v1238, 0.01
          %v1267 = vmul.f32 %v1239, 0.01
          %v1268 = vmul.f32 %v1240, 0.01
          %v1269 = vmul.f32 %v1241, 0.01
          %v1270 = vmul.f32 %v1242, 0.01
          %v1271 = vmul.f32 %v1243, 0.01
          %v1272 = vmul.f32 %v1244, 0.01
          %v1273 = vmul.f32 %v1245, 0.01
          %v1274 = vmul.f32 %v1246, 0.01
          %v1275 = vmul.f32 %v1247, 0.01
          %v1276 = vmul.f32 %v1248, 0.01
          %v1277 = vmul.f32 %v1249, 0.01
          %v1278 = vmul.f32 %v1250, 0.01
          %v1279 = vmul.f32 %v1251, 0.01
          %v1280 = vmul.f32 %v1252, 0.01
          %v1281 = vmul.f32 %v1253, 0.01
          %v1282 = vmax.f32 %v1226, %v1254
          %v1283 = vmax.f32 %v1227, %v1255
          %v1284 = vmax.f32 %v1228, %v1256
          %v1285 = vmax.f32 %v1229, %v1257
          %v1286 = vmax.f32 %v1230, %v1258
          %v1287 = vmax.f32 %v1231, %v1259
          %v1288 = vmax.f32 %v1232, %v1260
          %v1289 = vmax.f32 %v1233, %v1261
          %v1290 = vmax.f32 %v1234, %v1262
          %v1291 = vmax.f32 %v1235, %v1263
          %v1292 = vmax.f32 %v1236, %v1264
          %v1293 = vmax.f32 %v1237, %v1265
          %v1294 = vmax.f32 %v1238, %v1266
          %v1295 = vmax.f32 %v1239, %v1267
          %v1296 = vmax.f32 %v1240, %v1268
          %v1297 = vmax.f32 %v1241, %v1269
          %v1298 = vmax.f32 %v1242, %v1270
          %v1299 = vmax.f32 %v1243, %v1271
          %v1300 = vmax.f32 %v1244, %v1272
          %v1301 = vmax.f32 %v1245, %v1273
          %v1302 = vmax.f32 %v1246, %v1274
          %v1303 = vmax.f32 %v1247, %v1275
          %v1304 = vmax.f32 %v1248, %v1276
          %v1305 = vmax.f32 %v1249, %v1277
          %v1306 = vmax.f32 %v1250, %v1278
          %v1307 = vmax.f32 %v1251, %v1279
          %v1308 = vmax.f32 %v1252, %v1280
          %v1309 = vmax.f32 %v1253, %v1281
          %v1310 = vmul.f32 %v1198, %v1282
          %v1311 = vmul.f32 %v1199, %v1283
          %v1312 = vmul.f32 %v1200, %v1284
          %v1313 = vmul.f32 %v1201, %v1285
          %v1314 = vmul.f32 %v1202, %v1286
          %v1315 = vmul.f32 %v1203, %v1287
          %v1316 = vmul.f32 %v1204, %v1288
          %v1317 = vmul.f32 %v1205, %v1289
          %v1318 = vmul.f32 %v1206, %v1290
          %v1319 = vmul.f32 %v1207, %v1291
          %v1320 = vmul.f32 %v1208, %v1292
          %v1321 = vmul.f32 %v1209, %v1293
          %v1322 = vmul.f32 %v1210, %v1294
          %v1323 = vmul.f32 %v1211, %v1295
          %v1324 = vmul.f32 %v1212, %v1296
          %v1325 = vmul.f32 %v1213, %v1297
          %v1326 = vmul.f32 %v1214, %v1298
          %v1327 = vmul.f32 %v1215, %v1299
          %v1328 = vmul.f32 %v1216, %v1300
          %v1329 = vmul.f32 %v1217, %v1301
          %v1330 = vmul.f32 %v1218, %v1302
          %v1331 = vmul.f32 %v1219, %v1303
          %v1332 = vmul.f32 %v1220, %v1304
          %v1333 = vmul.f32 %v1221, %v1305
          %v1334 = vmul.f32 %v1222, %v1306
          %v1335 = vmul.f32 %v1223, %v1307
          %v1336 = vmul.f32 %v1224, %v1308
          %v1337 = vmul.f32 %v1225, %v1309
          %v1338 = vadd.f32 %v1310, %v1311
          %v1339 = vadd.f32 %v1338, %v1312
          %v1340 = vadd.f32 %v1339, %v1313
          %v1341 = vadd.f32 %v1340, %v1314
          %v1342 = vadd.f32 %v1341, %v1315
          %v1343 = vsel %vm293, %v1316, 0.0
          %v1344 = vadd.f32 %v1342, %v1343
          %1345 = vadd.xlane.f32.xlu0 %v1344
          %v1346 = vpop.xlane.xlu0 %1345
          %v1347 = vadd.f32 %v1317, %v1318
          %v1348 = vadd.f32 %v1347, %v1319
          %v1349 = vadd.f32 %v1348, %v1320
          %v1350 = vadd.f32 %v1349, %v1321
          %v1351 = vadd.f32 %v1350, %v1322
          %v1352 = vsel %vm293, %v1323, 0.0
          %v1353 = vadd.f32 %v1351, %v1352
          %1354 = vadd.xlane.f32.xlu0 %v1353
          %v1355 = vpop.xlane.xlu0 %1354
          %v1356 = vadd.f32 %v1324, %v1325
          %v1357 = vadd.f32 %v1356, %v1326
          %v1358 = vadd.f32 %v1357, %v1327
          %v1359 = vadd.f32 %v1358, %v1328
          %v1360 = vadd.f32 %v1359, %v1329
          %v1361 = vsel %vm293, %v1330, 0.0
          %v1362 = vadd.f32 %v1360, %v1361
          %1363 = vadd.xlane.f32.xlu0 %v1362
          %v1364 = vpop.xlane.xlu0 %1363
          %v1365 = vsel %vm460, %v1331, 0.0
          %v1366 = vsel %vm460, %v1332, 0.0
          %v1367 = vadd.f32 %v1365, %v1366
          %v1368 = vsel %vm460, %v1333, 0.0
          %v1369 = vadd.f32 %v1367, %v1368
          %v1370 = vsel %vm460, %v1334, 0.0
          %v1371 = vadd.f32 %v1369, %v1370
          %v1372 = vsel %vm460, %v1335, 0.0
          %v1373 = vadd.f32 %v1371, %v1372
          %v1374 = vsel %vm460, %v1336, 0.0
          %v1375 = vadd.f32 %v1373, %v1374
          %v1376 = vsel %vm315, %v1337, 0.0
          %v1377 = vadd.f32 %v1375, %v1376
          %1378 = vadd.xlane.f32.xlu0 %v1377
          %v1379 = vpop.xlane.xlu0 %1378
          %v1380 = vadd.f32 %v1346, %v1355
          %v1381 = vadd.f32 %v1380, %v1364
          %v1382 = vsel %vm460, %v1379, 0.0
          %v1383 = vadd.f32 %v1381, %v1382
          %v1384 = vrot.slane %v1383, 4
          %v1385 = vadd.f32 %v1383, %v1384
          %v1386 = vrot.slane %v1385, 2
          %v1387 = vadd.f32 %v1385, %v1386
          %v1388 = vrot.slane %v1387, 1
          %v1389 = vadd.f32 %v1387, %v1388
          %v1390 = vadd.f32 %v1155, %v1197
          %v1391 = vadd.f32 %v1390, %v1389
          %v1392 = vadd.f32 %v1391, %v340
          %v1393 = vstv %s342
          %vm1394 = vcmp.eq.s32.totalorder %v327, %v1393
          %v1395 = vld [vmem:[%s270] sm:$0x1]
          %1397 = vset.pattern.permute.xlu0 0
          %1398 = vperm.xlu0 %1397, %v1392
          %v1399 = vpop.permute.xlu0 %1398
          %v1401 = vsel %vm1394, %v1399, %v1395
          %1402 = vst.msk [vmem:[%s270] sm:$0x1] %vm319, %v1401
        $region53: #{signet_forward.3} parent=47 // loop_footer
          %s346 = sadd.s32 1, %s342
        $region54: #{signet_forward.3} parent=47 // loop_footer_branch
          %341 = sbr.rel target = $region50
        $region55: #{signet_forward.3} parent=47 // loop_exit
          _
        %s1403 = sand.u32 %s183, 1
        %s1404 = scalar_lea.sflag [#allocation8], %s1403
        %s1405 = sand.u32 %s183, 1
        %s1406 = scalar_lea.vmem [#allocation7], %s1405
        // Predicated region
        $region56: #{signet_forward.3} parent=47 // pred_check
          %p1407 = pneg %p193
        $region57: #{signet_forward.3} parent=47 // pred_check_branch
          %1409 = sbr.rel (%p1407) target = $region59
        $region58: #{signet_forward.3} parent=47 // pred_region
          %s1411 = ssub.s32 16, 16
          %1412 = vsyncadd %s1404, %s1411
          %s1413 = smul.addr %s23, 16
          %s1414 = scalar_lea.hbm %s7, %s1413
          %s1416 = sshll.u32 %s1406, 4
          %s1417 = int_to_ptr.vmem [resolvable:$true] %s1416
          %1419 = dma.vmem_to_hbm [thread:$0]  %s1417, 16, %s1414, %s1404
        $region59: #{signet_forward.3} parent=47 // pred_fallthru
          _
      $region48: #{signet_forward.3} parent=5 // pred_fallthru
        _
      %p1420 = scmp.le.s32.totalorder 2, %s18
      // Predicated region
      $region60: #{signet_forward.3} parent=5 // pred_check
        %p1421 = pneg %p1420
      $region61: #{signet_forward.3} parent=5 // pred_check_branch
        %1423 = sbr.rel (%p1421) target = $region63
      $region62: #{signet_forward.3} parent=5 // pred_region
        %s1424 = ssub.s32 %s18, 2
        // Predicated region
        $region64: #{signet_forward.3} parent=62 // pred_check
          %p1425 = pneg %p199
        $region65: #{signet_forward.3} parent=62 // pred_check_branch
          %1427 = sbr.rel (%p1425) target = $region67
        $region66: #{signet_forward.3} parent=62 // pred_region
          %s1428 = sand.u32 %s184, 1
          %s1429 = scalar_lea.sflag [#allocation8], %s1428
          %s1430 = sand.u32 %s184, 1
          %s1431 = scalar_lea.vmem [#allocation7], %s1430
          %1432 = dma.done %s1429, 16
        $region67: #{signet_forward.3} parent=62 // pred_fallthru
          _
      $region63: #{signet_forward.3} parent=5 // pred_fallthru
        _
    $region6: #{signet_forward.3} parent=1 // loop_footer
      %s22 = sadd.s32 1, %s18
    $region7: #{signet_forward.3} parent=1 // loop_footer_branch
      %17 = sbr.rel target = $region3
    $region8: #{signet_forward.3} parent=1 // loop_exit
      _
    %1433 = vsyncpa [#allocation8], 1
    %s1434 = scalar_lea.sflag [#allocation8], 1
    %1435 = vsyncpa %s1434, 1

</llo_original>
